<compile_context>
chip_gen: v7x
topology: tpu7x:2x2x1
jax: 0.10.0
libtpu: 0.0.40
codegen_flags: <defaults>
</compile_context>

<pallas_src>
import functools

import jax
import jax.numpy as jnp
import numpy as np
from jax.experimental import pallas as pl
from jax.experimental.pallas import tpu as pltpu


def _univariate_activation_ref(x, eta1, eta2, d1, d2):
    """Piecewise-linear activation, identical regions to the torch module."""
    f1 = eta2 * (x - d2) + eta1 * (d2 - d1)      # x >= d2
    f2 = eta1 * (x - d1)                         # d1 <= x < d2
    f4 = eta1 * (x + d1)                         # -d2 <= x < -d1
    f5 = eta2 * (x + d2) + eta1 * (d1 - d2)      # x < -d2
    return jnp.where(
        x >= d2, f1,
        jnp.where(x >= d1, f2,
                  jnp.where(x >= -d1, jnp.zeros_like(x),
                            jnp.where(x >= -d2, f4, f5))))


def _maf_kernel(scal_ref, w0_ref, t0_ref, m1_ref, m2_ref, b_ref, out_ref, *,
                block_num):
    # Scalars live in SMEM; read them exactly once.
    inv_L = scal_ref[0]
    eta1 = scal_ref[1]
    eta2 = scal_ref[2]
    d1 = scal_ref[3]
    d2 = scal_ref[4]
    c = 1.0 - inv_L
    neg_d1 = -d1
    neg_d2 = -d2

    def act_minus_b(t):
        # Branch-free rewrite of the 5-region piecewise-linear activation.
        # Valid for 0 <= d1 <= d2 (the module's _project_parameters enforces
        # delta1 >= 0 and delta2 >= delta1).  The per-column bias subtraction
        # is fused in as the epilogue.
        lin = jnp.clip(t, d1, d2) + jnp.clip(t, neg_d2, neg_d1)      # eta1 part
        sat = jnp.maximum(t - d2, 0.0) + jnp.minimum(t + d2, 0.0)    # eta2 part
        return eta1 * lin + eta2 * sat - b_ref[...]

    def mxu(m_ref, x_f32):
        # Single-pass bf16 MXU matmul with f32 accumulation: the invariant
        # matrix is already bf16 in VMEM, only the streamed operand is cast.
        return jnp.dot(m_ref[...], x_f32.astype(jnp.bfloat16),
                       preferred_element_type=jnp.float32)

    # Block 0: residual_0 == W0 exactly, and t_0 = M1 @ W0 was precomputed in
    # the glue, so this block is a single matmul.
    out_ref[0] = mxu(m2_ref, act_minus_b(t0_ref[...]))

    # Remaining blocks: read the carry straight back out of the output ref so
    # no full tile stays live across the (small, static) unrolled loop.
    for i in range(1, block_num):
        residual = c * out_ref[i - 1] + inv_L * w0_ref[...]          # f32 axpy
        out_ref[i] = mxu(m2_ref, act_minus_b(mxu(m1_ref, residual)))


def maf_srl_forward(W0, M1, M2, b, scalars, block_num):
    n = W0.shape[0]

    # Parameter/W0-only precompute (glue): the first block's linear transform.
    t0 = jnp.matmul(M1, W0, precision=jax.lax.Precision.HIGHEST)
    m1_bf16 = M1.astype(jnp.bfloat16)
    m2_bf16 = M2.astype(jnp.bfloat16)
    b2d = b.reshape(1, n).astype(jnp.float32)

    # Whole-array, single-buffered VMEM residency (no grid -> no pipeline, no
    # redundant double buffering).  Raise the scoped VMEM limit only if the
    # footprint actually needs it.
    vmem_bytes = (2 * n * n * 4          # W0, t0 (f32)
                  + 2 * n * n * 2        # M1, M2 (bf16)
                  + n * 4                # b
                  + block_num * n * n * 4)
    compiler_params = None
    if vmem_bytes > 24 * 1024 * 1024:
        compiler_params = pltpu.CompilerParams(
            vmem_limit_bytes=int(vmem_bytes * 1.5))

    vmem = pltpu.MemorySpace.VMEM
    out = pl.pallas_call(
        functools.partial(_maf_kernel, block_num=block_num),
        out_shape=jax.ShapeDtypeStruct((block_num, n, n), jnp.float32),
        in_specs=[
            pl.BlockSpec(memory_space=pltpu.MemorySpace.SMEM),   # scalars
            pl.BlockSpec(memory_space=vmem),                     # W0  (f32)
            pl.BlockSpec(memory_space=vmem),                     # t0  (f32)
            pl.BlockSpec(memory_space=vmem),                     # M1  (bf16)
            pl.BlockSpec(memory_space=vmem),                     # M2  (bf16)
            pl.BlockSpec(memory_space=vmem),                     # b   (1, n)
        ],
        out_specs=pl.BlockSpec(memory_space=vmem),
        compiler_params=compiler_params,
    )(scalars, W0, t0, m1_bf16, m2_bf16, b2d)

    # W_list semantics of the torch module: [W] followed by block_num outputs.
    return [W0] + [out[i] for i in range(block_num)]


def maf_srl_reference(W0, M1, M2, b, inv_L, eta1, eta2, d1, d2, block_num):
    """Plain-JAX reference mirroring the torch forward pass (full precision)."""
    hi = jax.lax.Precision.HIGHEST
    W_list = [W0]
    for _ in range(block_num):
        prev = W_list[-1]
        residual = prev - inv_L * (prev - W0)
        t = jnp.matmul(M1, residual, precision=hi)
        act = _univariate_activation_ref(t, eta1, eta2, d1, d2)
        W_list.append(jnp.matmul(M2, act - b[None, :], precision=hi))
    return W_list


if __name__ == "__main__":
    N = 128           # n_nodes (lane-aligned)
    BLOCK_NUM = 3
    SPARSITY = 0.3
    INIT_SCALE = 0.1

    key = jax.random.PRNGKey(0)
    kW, kA, kMask, kq, kb = jax.random.split(key, 5)

    # Forward input W (the module calls forward(self.W), shape (N, N)).
    W0 = jax.random.normal(kW, (N, N), dtype=jnp.float32)

    # Deterministic synthetic parameter init (shapes from the module __init__).
    # Sparse A with density=0.3 and scale=0.1; add identity so the synthetic A
    # (and A @ diag(q)) is well-conditioned and invertible.
    mask = (jax.random.uniform(kMask, (N, N)) < SPARSITY).astype(jnp.float32)
    A = INIT_SCALE * jax.random.normal(kA, (N, N), dtype=jnp.float32) * mask
    A = A + jnp.eye(N, dtype=jnp.float32)
    q = jax.random.uniform(kq, (N,), dtype=jnp.float32, minval=0.5, maxval=1.5)
    # Nonzero b so the broadcast/subtract path is numerically exercised.
    b = 0.1 * jax.random.normal(kb, (N,), dtype=jnp.float32)
    eta1 = jnp.float32(1.0)
    eta2 = jnp.float32(0.5)
    delta1 = jnp.float32(0.5)
    delta2 = jnp.float32(1.0)
    L = jnp.float32(1.7)   # non-trivial L so the block recursion is exercised

    # The branch-free in-kernel activation requires 0 <= delta1 <= delta2
    # (the module's _project_parameters guarantees this).
    assert 0.0 <= float(delta1) <= float(delta2)

    # Parameter-only precompute (glue): the two inverses used by every block.
    M1 = jnp.linalg.inv(A @ jnp.diag(q)).astype(jnp.float32)
    M2 = jnp.linalg.inv(A.T).astype(jnp.float32)

    scalars = jnp.array([1.0 / L, eta1, eta2, delta1, delta2],
                        dtype=jnp.float32)

    W_list = maf_srl_forward(W0, M1, M2, b, scalars, BLOCK_NUM)
    W_list = [jax.block_until_ready(w) for w in W_list]

    ref_list = maf_srl_reference(W0, M1, M2, b, 1.0 / L, eta1, eta2,
                                 delta1, delta2, BLOCK_NUM)

    ok = all(
        np.allclose(np.asarray(a), np.asarray(r), rtol=5e-2, atol=5e-2)
        and np.all(np.isfinite(np.asarray(a)))
        for a, r in zip(W_list, ref_list)
    )
    assert ok, "Pallas output does not match JAX reference"
    print("KERNEL_OK")
</pallas_src>

<mosaic_0001>
module attributes {stable_mosaic.version = 11 : i64} {
  func.func @_maf_kernel(%arg0: memref<5xf32, #tpu.memory_space<smem>>, %arg1: memref<128x128xf32, #tpu.memory_space<vmem>>, %arg2: memref<128x128xf32, #tpu.memory_space<vmem>>, %arg3: memref<128x128xbf16, #tpu.memory_space<vmem>>, %arg4: memref<128x128xbf16, #tpu.memory_space<vmem>>, %arg5: memref<1x128xf32, #tpu.memory_space<vmem>>, %arg6: memref<3x128x128xf32, #tpu.memory_space<vmem>>) attributes {dimension_semantics = [], scalar_prefetch = 0 : i64, scratch_operands = 0 : i64, tpu.core_type = #tpu.core_type<tc>} {
    %c0 = arith.constant 0 : index
    %0 = memref.load %arg0[%c0] : memref<5xf32, #tpu.memory_space<smem>>
    %c1 = arith.constant 1 : index
    %1 = memref.load %arg0[%c1] : memref<5xf32, #tpu.memory_space<smem>>
    %c2 = arith.constant 2 : index
    %2 = memref.load %arg0[%c2] : memref<5xf32, #tpu.memory_space<smem>>
    %c3 = arith.constant 3 : index
    %3 = memref.load %arg0[%c3] : memref<5xf32, #tpu.memory_space<smem>>
    %c4 = arith.constant 4 : index
    %4 = memref.load %arg0[%c4] : memref<5xf32, #tpu.memory_space<smem>>
    %cst = arith.constant 1.000000e+00 : f32
    %5 = arith.subf %cst, %0 : f32
    %cst_0 = arith.constant 0.000000e+00 : f32
    %6 = arith.subf %cst_0, %3 : f32
    %cst_1 = arith.constant 0.000000e+00 : f32
    %7 = arith.subf %cst_1, %4 : f32
    %c0_2 = arith.constant 0 : index
    %c0_3 = arith.constant 0 : index
    %8 = vector.load %arg2[%c0_2, %c0_3] : memref<128x128xf32, #tpu.memory_space<vmem>>, vector<128x128xf32>
    %9 = vector.broadcast %3 : f32 to vector<128x128xf32>
    %10 = arith.maximumf %9, %8 : vector<128x128xf32>
    %11 = vector.broadcast %4 : f32 to vector<128x128xf32>
    %12 = arith.minimumf %11, %10 : vector<128x128xf32>
    %13 = vector.broadcast %7 : f32 to vector<128x128xf32>
    %14 = arith.maximumf %13, %8 : vector<128x128xf32>
    %15 = vector.broadcast %6 : f32 to vector<128x128xf32>
    %16 = arith.minimumf %15, %14 : vector<128x128xf32>
    %17 = arith.addf %12, %16 : vector<128x128xf32>
    %18 = vector.broadcast %4 : f32 to vector<128x128xf32>
    %19 = arith.subf %8, %18 : vector<128x128xf32>
    %cst_4 = arith.constant 0.000000e+00 : f32
    %20 = vector.broadcast %cst_4 : f32 to vector<128x128xf32>
    %21 = arith.maximumf %19, %20 : vector<128x128xf32>
    %22 = vector.broadcast %4 : f32 to vector<128x128xf32>
    %23 = arith.addf %8, %22 : vector<128x128xf32>
    %cst_5 = arith.constant 0.000000e+00 : f32
    %24 = vector.broadcast %cst_5 : f32 to vector<128x128xf32>
    %25 = arith.minimumf %23, %24 : vector<128x128xf32>
    %26 = arith.addf %21, %25 : vector<128x128xf32>
    %27 = vector.broadcast %1 : f32 to vector<128x128xf32>
    %28 = arith.mulf %27, %17 : vector<128x128xf32>
    %29 = vector.broadcast %2 : f32 to vector<128x128xf32>
    %30 = arith.mulf %29, %26 : vector<128x128xf32>
    %31 = arith.addf %28, %30 : vector<128x128xf32>
    %c0_6 = arith.constant 0 : index
    %c0_7 = arith.constant 0 : index
    %32 = vector.load %arg5[%c0_6, %c0_7] : memref<1x128xf32, #tpu.memory_space<vmem>>, vector<1x128xf32>
    %33 = vector.broadcast %32 : vector<1x128xf32> to vector<128x128xf32>
    %34 = arith.subf %31, %33 : vector<128x128xf32>
    %c0_8 = arith.constant 0 : index
    %c0_9 = arith.constant 0 : index
    %35 = vector.load %arg4[%c0_8, %c0_9] : memref<128x128xbf16, #tpu.memory_space<vmem>>, vector<128x128xbf16>
    %36 = arith.truncf %34 : vector<128x128xf32> to vector<128x128xbf16>
    %cst_10 = arith.constant dense<0.000000e+00> : vector<128x128xf32>
    %37 = tpu.matmul %35, %36, %cst_10 {dimension_numbers = #tpu.dot_dimension_numbers<[1], [0], [0], [1], [0, 0, 1, 1], [], []>} : vector<128x128xbf16>, vector<128x128xbf16>, vector<128x128xf32> -> vector<128x128xf32>
    %c0_11 = arith.constant 0 : index
    %c0_12 = arith.constant 0 : index
    %c0_13 = arith.constant 0 : index
    %38 = vector.load %arg6[%c0_11, %c0_12, %c0_13] : memref<3x128x128xf32, #tpu.memory_space<vmem>>, vector<1x128x128xf32>
    %39 = vector.shape_cast %38 : vector<1x128x128xf32> to vector<128x128xf32>
    %40 = vector.shape_cast %37 : vector<128x128xf32> to vector<1x128x128xf32>
    tpu.vector_store %arg6[%c0_11, %c0_12, %c0_13], %40 {strides = array<i32>} : memref<3x128x128xf32, #tpu.memory_space<vmem>>, vector<1x128x128xf32>,
    %c0_14 = arith.constant 0 : index
    %c0_15 = arith.constant 0 : index
    %c0_16 = arith.constant 0 : index
    %41 = vector.load %arg6[%c0_14, %c0_15, %c0_16] : memref<3x128x128xf32, #tpu.memory_space<vmem>>, vector<1x128x128xf32>
    %42 = vector.shape_cast %41 : vector<1x128x128xf32> to vector<128x128xf32>
    %43 = vector.broadcast %5 : f32 to vector<128x128xf32>
    %44 = arith.mulf %43, %42 : vector<128x128xf32>
    %c0_17 = arith.constant 0 : index
    %c0_18 = arith.constant 0 : index
    %45 = vector.load %arg1[%c0_17, %c0_18] : memref<128x128xf32, #tpu.memory_space<vmem>>, vector<128x128xf32>
    %46 = vector.broadcast %0 : f32 to vector<128x128xf32>
    %47 = arith.mulf %46, %45 : vector<128x128xf32>
    %48 = arith.addf %44, %47 : vector<128x128xf32>
    %c0_19 = arith.constant 0 : index
    %c0_20 = arith.constant 0 : index
    %49 = vector.load %arg3[%c0_19, %c0_20] : memref<128x128xbf16, #tpu.memory_space<vmem>>, vector<128x128xbf16>
    %50 = arith.truncf %48 : vector<128x128xf32> to vector<128x128xbf16>
    %cst_21 = arith.constant dense<0.000000e+00> : vector<128x128xf32>
    %51 = tpu.matmul %49, %50, %cst_21 {dimension_numbers = #tpu.dot_dimension_numbers<[1], [0], [0], [1], [0, 0, 1, 1], [], []>} : vector<128x128xbf16>, vector<128x128xbf16>, vector<128x128xf32> -> vector<128x128xf32>
    %52 = vector.broadcast %3 : f32 to vector<128x128xf32>
    %53 = arith.maximumf %52, %51 : vector<128x128xf32>
    %54 = vector.broadcast %4 : f32 to vector<128x128xf32>
    %55 = arith.minimumf %54, %53 : vector<128x128xf32>
    %56 = vector.broadcast %7 : f32 to vector<128x128xf32>
    %57 = arith.maximumf %56, %51 : vector<128x128xf32>
    %58 = vector.broadcast %6 : f32 to vector<128x128xf32>
    %59 = arith.minimumf %58, %57 : vector<128x128xf32>
    %60 = arith.addf %55, %59 : vector<128x128xf32>
    %61 = vector.broadcast %4 : f32 to vector<128x128xf32>
    %62 = arith.subf %51, %61 : vector<128x128xf32>
    %cst_22 = arith.constant 0.000000e+00 : f32
    %63 = vector.broadcast %cst_22 : f32 to vector<128x128xf32>
    %64 = arith.maximumf %62, %63 : vector<128x128xf32>
    %65 = vector.broadcast %4 : f32 to vector<128x128xf32>
    %66 = arith.addf %51, %65 : vector<128x128xf32>
    %cst_23 = arith.constant 0.000000e+00 : f32
    %67 = vector.broadcast %cst_23 : f32 to vector<128x128xf32>
    %68 = arith.minimumf %66, %67 : vector<128x128xf32>
    %69 = arith.addf %64, %68 : vector<128x128xf32>
    %70 = vector.broadcast %1 : f32 to vector<128x128xf32>
    %71 = arith.mulf %70, %60 : vector<128x128xf32>
    %72 = vector.broadcast %2 : f32 to vector<128x128xf32>
    %73 = arith.mulf %72, %69 : vector<128x128xf32>
    %74 = arith.addf %71, %73 : vector<128x128xf32>
    %c0_24 = arith.constant 0 : index
    %c0_25 = arith.constant 0 : index
    %75 = vector.load %arg5[%c0_24, %c0_25] : memref<1x128xf32, #tpu.memory_space<vmem>>, vector<1x128xf32>
    %76 = vector.broadcast %75 : vector<1x128xf32> to vector<128x128xf32>
    %77 = arith.subf %74, %76 : vector<128x128xf32>
    %c0_26 = arith.constant 0 : index
    %c0_27 = arith.constant 0 : index
    %78 = vector.load %arg4[%c0_26, %c0_27] : memref<128x128xbf16, #tpu.memory_space<vmem>>, vector<128x128xbf16>
    %79 = arith.truncf %77 : vector<128x128xf32> to vector<128x128xbf16>
    %cst_28 = arith.constant dense<0.000000e+00> : vector<128x128xf32>
    %80 = tpu.matmul %78, %79, %cst_28 {dimension_numbers = #tpu.dot_dimension_numbers<[1], [0], [0], [1], [0, 0, 1, 1], [], []>} : vector<128x128xbf16>, vector<128x128xbf16>, vector<128x128xf32> -> vector<128x128xf32>
    %c1_29 = arith.constant 1 : index
    %c0_30 = arith.constant 0 : index
    %c0_31 = arith.constant 0 : index
    %81 = vector.load %arg6[%c1_29, %c0_30, %c0_31] : memref<3x128x128xf32, #tpu.memory_space<vmem>>, vector<1x128x128xf32>
    %82 = vector.shape_cast %81 : vector<1x128x128xf32> to vector<128x128xf32>
    %83 = vector.shape_cast %80 : vector<128x128xf32> to vector<1x128x128xf32>
    tpu.vector_store %arg6[%c1_29, %c0_30, %c0_31], %83 {strides = array<i32>} : memref<3x128x128xf32, #tpu.memory_space<vmem>>, vector<1x128x128xf32>,
    %c1_32 = arith.constant 1 : index
    %c0_33 = arith.constant 0 : index
    %c0_34 = arith.constant 0 : index
    %84 = vector.load %arg6[%c1_32, %c0_33, %c0_34] : memref<3x128x128xf32, #tpu.memory_space<vmem>>, vector<1x128x128xf32>
    %85 = vector.shape_cast %84 : vector<1x128x128xf32> to vector<128x128xf32>
    %86 = vector.broadcast %5 : f32 to vector<128x128xf32>
    %87 = arith.mulf %86, %85 : vector<128x128xf32>
    %c0_35 = arith.constant 0 : index
    %c0_36 = arith.constant 0 : index
    %88 = vector.load %arg1[%c0_35, %c0_36] : memref<128x128xf32, #tpu.memory_space<vmem>>, vector<128x128xf32>
    %89 = vector.broadcast %0 : f32 to vector<128x128xf32>
    %90 = arith.mulf %89, %88 : vector<128x128xf32>
    %91 = arith.addf %87, %90 : vector<128x128xf32>
    %c0_37 = arith.constant 0 : index
    %c0_38 = arith.constant 0 : index
    %92 = vector.load %arg3[%c0_37, %c0_38] : memref<128x128xbf16, #tpu.memory_space<vmem>>, vector<128x128xbf16>
    %93 = arith.truncf %91 : vector<128x128xf32> to vector<128x128xbf16>
    %cst_39 = arith.constant dense<0.000000e+00> : vector<128x128xf32>
    %94 = tpu.matmul %92, %93, %cst_39 {dimension_numbers = #tpu.dot_dimension_numbers<[1], [0], [0], [1], [0, 0, 1, 1], [], []>} : vector<128x128xbf16>, vector<128x128xbf16>, vector<128x128xf32> -> vector<128x128xf32>
    %95 = vector.broadcast %3 : f32 to vector<128x128xf32>
    %96 = arith.maximumf %95, %94 : vector<128x128xf32>
    %97 = vector.broadcast %4 : f32 to vector<128x128xf32>
    %98 = arith.minimumf %97, %96 : vector<128x128xf32>
    %99 = vector.broadcast %7 : f32 to vector<128x128xf32>
    %100 = arith.maximumf %99, %94 : vector<128x128xf32>
    %101 = vector.broadcast %6 : f32 to vector<128x128xf32>
    %102 = arith.minimumf %101, %100 : vector<128x128xf32>
    %103 = arith.addf %98, %102 : vector<128x128xf32>
    %104 = vector.broadcast %4 : f32 to vector<128x128xf32>
    %105 = arith.subf %94, %104 : vector<128x128xf32>
    %cst_40 = arith.constant 0.000000e+00 : f32
    %106 = vector.broadcast %cst_40 : f32 to vector<128x128xf32>
    %107 = arith.maximumf %105, %106 : vector<128x128xf32>
    %108 = vector.broadcast %4 : f32 to vector<128x128xf32>
    %109 = arith.addf %94, %108 : vector<128x128xf32>
    %cst_41 = arith.constant 0.000000e+00 : f32
    %110 = vector.broadcast %cst_41 : f32 to vector<128x128xf32>
    %111 = arith.minimumf %109, %110 : vector<128x128xf32>
    %112 = arith.addf %107, %111 : vector<128x128xf32>
    %113 = vector.broadcast %1 : f32 to vector<128x128xf32>
    %114 = arith.mulf %113, %103 : vector<128x128xf32>
    %115 = vector.broadcast %2 : f32 to vector<128x128xf32>
    %116 = arith.mulf %115, %112 : vector<128x128xf32>
    %117 = arith.addf %114, %116 : vector<128x128xf32>
    %c0_42 = arith.constant 0 : index
    %c0_43 = arith.constant 0 : index
    %118 = vector.load %arg5[%c0_42, %c0_43] : memref<1x128xf32, #tpu.memory_space<vmem>>, vector<1x128xf32>
    %119 = vector.broadcast %118 : vector<1x128xf32> to vector<128x128xf32>
    %120 = arith.subf %117, %119 : vector<128x128xf32>
    %c0_44 = arith.constant 0 : index
    %c0_45 = arith.constant 0 : index
    %121 = vector.load %arg4[%c0_44, %c0_45] : memref<128x128xbf16, #tpu.memory_space<vmem>>, vector<128x128xbf16>
    %122 = arith.truncf %120 : vector<128x128xf32> to vector<128x128xbf16>
    %cst_46 = arith.constant dense<0.000000e+00> : vector<128x128xf32>
    %123 = tpu.matmul %121, %122, %cst_46 {dimension_numbers = #tpu.dot_dimension_numbers<[1], [0], [0], [1], [0, 0, 1, 1], [], []>} : vector<128x128xbf16>, vector<128x128xbf16>, vector<128x128xf32> -> vector<128x128xf32>
    %c2_47 = arith.constant 2 : index
    %c0_48 = arith.constant 0 : index
    %c0_49 = arith.constant 0 : index
    %124 = vector.load %arg6[%c2_47, %c0_48, %c0_49] : memref<3x128x128xf32, #tpu.memory_space<vmem>>, vector<1x128x128xf32>
    %125 = vector.shape_cast %124 : vector<1x128x128xf32> to vector<128x128xf32>
    %126 = vector.shape_cast %123 : vector<128x128xf32> to vector<1x128x128xf32>
    tpu.vector_store %arg6[%c2_47, %c0_48, %c0_49], %126 {strides = array<i32>} : memref<3x128x128xf32, #tpu.memory_space<vmem>>, vector<1x128x128xf32>,
    return
  }
}

</mosaic_0001>

<llo_original>
// kernel: tpu_custom_call.1
$region0: #{tpu_custom_call.1}
  #allocation0 [shape = 'u32[]', space=smem, size = 0x4, offset = 0x4, fixed_abs, tag = 'smem constant byte address 0x4 - core index']
  #allocation1 [shape = 'u32[144,128]{1,0:T(1,128)}', space=vmem, size = 0x12000, scoped, tag = 'internal scratch']
  %s0 = inlined_call_operand.hbm [shape: f32[5], index: 0, kind: input, shape index: {}]
  %s1 = inlined_call_operand.hbm [shape: f32[128,128], index: 1, kind: input, shape index: {}]
  %s2 = inlined_call_operand.hbm [shape: f32[128,128], index: 2, kind: input, shape index: {}]
  %s3 = inlined_call_operand.hbm [shape: bf16[128,128], index: 3, kind: input, shape index: {}]
  %s4 = inlined_call_operand.hbm [shape: bf16[128,128], index: 4, kind: input, shape index: {}]
  %s5 = inlined_call_operand.vmem [shape: f32[1,128], index: 5, kind: input, shape index: {}]
  %s6 = inlined_call_operand.hbm [shape: f32[3,128,128], index: 6, kind: output, shape index: {}]
  %s7 = sld [smem:[#allocation0]]
  $region54: #{tpu_custom_call.1} parent=0
    _
  %s9 = ssub.s32 1, %s7
  %s10 = scalar_select 0, %s9, %s7
  $region1: #{tpu_custom_call.1} parent=0
    #allocation2 [shape = 'u8[512]{0}', space=smem, size = 0x200, scoped, tag = 'input window, operand 0, single buffered']
    #allocation3 [shape = 's32[1]{0}', space=sflag, size = 0x4, scoped, tag = 'scoped memory for tpu_custom_call.1']
    #allocation4 [shape = 's32[1]{0}', space=sflag, size = 0x4, scoped, tag = 'scoped memory for tpu_custom_call.1']
    #allocation5 [shape = 's32[1]{0}', space=sflag, size = 0x4, scoped, tag = 'scoped memory for tpu_custom_call.1']
    #allocation6 [shape = 'u8[65536]{0}', space=vmem, size = 0x10000, scoped, tag = 'input window, operand 1, single buffered']
    #allocation7 [shape = 'u8[65536]{0}', space=vmem, size = 0x10000, scoped, tag = 'input window, operand 2, single buffered']
    #allocation8 [shape = 's32[1]{0}', space=sflag, size = 0x4, scoped, tag = 'scoped memory for tpu_custom_call.1']
    #allocation9 [shape = 'u8[32768]{0}', space=vmem, size = 0x8000, scoped, tag = 'input window, operand 3, single buffered']
    #allocation10 [shape = 'u8[32768]{0}', space=vmem, size = 0x8000, scoped, tag = 'input window, operand 4, single buffered']
    #allocation11 [shape = 's32[1]{0}', space=sflag, size = 0x4, scoped, tag = 'scoped memory for tpu_custom_call.1']
    #allocation12 [shape = 'u8[196608]{0}', space=vmem, size = 0x30000, scoped, tag = 'output window, operand 0, single buffered']
    %11 = vsyncpa [#allocation5], 0
    %12 = vsyncpa [#allocation3], 0
    %13 = vsyncpa [#allocation8], 0
    %14 = vsyncpa [#allocation11], 0
    %15 = vsyncpa [#allocation4], 0
    // Predicated region
    $region2: #{tpu_custom_call.1} parent=1 // pred_check
      _
    $region3: #{tpu_custom_call.1} parent=1 // pred_check_branch
      %17 = sbr.rel (0) target = $region5
    $region4: #{tpu_custom_call.1} parent=1 // pred_region
      %s19 = ssub.s32 16, 16
      %20 = vsyncadd [#allocation5], %s19
      %23 = dma.hbm_to_smem %s0, 16, [#allocation2], [#allocation5]
    $region5: #{tpu_custom_call.1} parent=1 // pred_fallthru
      _
    // Predicated region
    $region6: #{tpu_custom_call.1} parent=1 // pred_check
      _
    $region7: #{tpu_custom_call.1} parent=1 // pred_check_branch
      %25 = sbr.rel (0) target = $region9
    $region8: #{tpu_custom_call.1} parent=1 // pred_region
      %s27 = ssub.s32 2048, 2048
      %28 = vsyncadd [#allocation3], %s27
      %s29 = sshll.u32 [#allocation6], 4
      %s30 = int_to_ptr.vmem [resolvable:$true] %s29
      %35 = dma.hbm_to_vmem [thread:$0]  %s1, 2048, %s30, [#allocation3], 128, 128, 8
    $region9: #{tpu_custom_call.1} parent=1 // pred_fallthru
      _
    // Predicated region
    $region10: #{tpu_custom_call.1} parent=1 // pred_check
      _
    $region11: #{tpu_custom_call.1} parent=1 // pred_check_branch
      %37 = sbr.rel (0) target = $region13
    $region12: #{tpu_custom_call.1} parent=1 // pred_region
      %s39 = ssub.s32 2048, 2048
      %40 = vsyncadd [#allocation8], %s39
      %s41 = sshll.u32 [#allocation7], 4
      %s42 = int_to_ptr.vmem [resolvable:$true] %s41
      %47 = dma.hbm_to_vmem [thread:$0]  %s2, 2048, %s42, [#allocation8], 128, 128, 8
    $region13: #{tpu_custom_call.1} parent=1 // pred_fallthru
      _
    // Predicated region
    $region14: #{tpu_custom_call.1} parent=1 // pred_check
      _
    $region15: #{tpu_custom_call.1} parent=1 // pred_check_branch
      %49 = sbr.rel (0) target = $region17
    $region16: #{tpu_custom_call.1} parent=1 // pred_region
      %s51 = ssub.s32 1024, 1024
      %52 = vsyncadd [#allocation8], %s51
      %s53 = sshll.u32 [#allocation9], 4
      %s54 = int_to_ptr.vmem [resolvable:$true] %s53
      %59 = dma.hbm_to_vmem [thread:$0]  %s3, 1024, %s54, [#allocation8], 64, 64, 4
    $region17: #{tpu_custom_call.1} parent=1 // pred_fallthru
      _
    // Predicated region
    $region18: #{tpu_custom_call.1} parent=1 // pred_check
      _
    $region19: #{tpu_custom_call.1} parent=1 // pred_check_branch
      %61 = sbr.rel (0) target = $region21
    $region20: #{tpu_custom_call.1} parent=1 // pred_region
      %s63 = ssub.s32 1024, 1024
      %64 = vsyncadd [#allocation11], %s63
      %s65 = sshll.u32 [#allocation10], 4
      %s66 = int_to_ptr.vmem [resolvable:$true] %s65
      %71 = dma.hbm_to_vmem [thread:$0]  %s4, 1024, %s66, [#allocation11], 64, 64, 4
    $region21: #{tpu_custom_call.1} parent=1 // pred_fallthru
      _
    // Predicated region
    $region22: #{tpu_custom_call.1} parent=1 // pred_check
      _
    $region23: #{tpu_custom_call.1} parent=1 // pred_check_branch
      %73 = sbr.rel (0) target = $region25
    $region24: #{tpu_custom_call.1} parent=1 // pred_region
      _
    $region25: #{tpu_custom_call.1} parent=1 // pred_fallthru
      _
    // Predicated region
    $region26: #{tpu_custom_call.1} parent=1 // pred_check
      _
    $region27: #{tpu_custom_call.1} parent=1 // pred_check_branch
      %75 = sbr.rel (0) target = $region29
    $region28: #{tpu_custom_call.1} parent=1 // pred_region
      %76 = dma.done [#allocation5], 16
    $region29: #{tpu_custom_call.1} parent=1 // pred_fallthru
      _
    // Predicated region
    $region30: #{tpu_custom_call.1} parent=1 // pred_check
      _
    $region31: #{tpu_custom_call.1} parent=1 // pred_check_branch
      %78 = sbr.rel (0) target = $region33
    $region32: #{tpu_custom_call.1} parent=1 // pred_region
      %79 = dma.done [#allocation3], 2048
    $region33: #{tpu_custom_call.1} parent=1 // pred_fallthru
      _
    // Predicated region
    $region34: #{tpu_custom_call.1} parent=1 // pred_check
      _
    $region35: #{tpu_custom_call.1} parent=1 // pred_check_branch
      %81 = sbr.rel (0) target = $region37
    $region36: #{tpu_custom_call.1} parent=1 // pred_region
      %82 = dma.done [#allocation8], 2048
    $region37: #{tpu_custom_call.1} parent=1 // pred_fallthru
      _
    // Predicated region
    $region38: #{tpu_custom_call.1} parent=1 // pred_check
      _
    $region39: #{tpu_custom_call.1} parent=1 // pred_check_branch
      %84 = sbr.rel (0) target = $region41
    $region40: #{tpu_custom_call.1} parent=1 // pred_region
      %85 = dma.done [#allocation8], 1024
    $region41: #{tpu_custom_call.1} parent=1 // pred_fallthru
      _
    // Predicated region
    $region42: #{tpu_custom_call.1} parent=1 // pred_check
      _
    $region43: #{tpu_custom_call.1} parent=1 // pred_check_branch
      %87 = sbr.rel (0) target = $region45
    $region44: #{tpu_custom_call.1} parent=1 // pred_region
      %88 = dma.done [#allocation11], 1024
    $region45: #{tpu_custom_call.1} parent=1 // pred_fallthru
      _
    %89 = sfence
    %s91 = sld [smem:[#allocation2]]
    %s92 = sld [smem:[#allocation2 + $0x1]]
    %s93 = sld [smem:[#allocation2 + $0x2]]
    %s94 = sld [smem:[#allocation2 + $0x3]]
    %s95 = sld [smem:[#allocation2 + $0x4]]
    %s96 = ssub.f32 1.0, %s91
    %s97 = ssub.f32 0.0, %s94
    %s98 = ssub.f32 0.0, %s95
    %v99 = vld [vmem:[#allocation7] sm:$0xff]
    %v100 = vld [vmem:[#allocation7 + $0x8] sm:$0xff]
    %v101 = vld [vmem:[#allocation7 + $0x10] sm:$0xff]
    %v102 = vld [vmem:[#allocation7 + $0x18] sm:$0xff]
    %v103 = vld [vmem:[#allocation7 + $0x20] sm:$0xff]
    %v104 = vld [vmem:[#allocation7 + $0x28] sm:$0xff]
    %v105 = vld [vmem:[#allocation7 + $0x30] sm:$0xff]
    %v106 = vld [vmem:[#allocation7 + $0x38] sm:$0xff]
    %v107 = vld [vmem:[#allocation7 + $0x40] sm:$0xff]
    %v108 = vld [vmem:[#allocation7 + $0x48] sm:$0xff]
    %v109 = vld [vmem:[#allocation7 + $0x50] sm:$0xff]
    %v110 = vld [vmem:[#allocation7 + $0x58] sm:$0xff]
    %v111 = vld [vmem:[#allocation7 + $0x60] sm:$0xff]
    %v112 = vld [vmem:[#allocation7 + $0x68] sm:$0xff]
    %v113 = vld [vmem:[#allocation7 + $0x70] sm:$0xff]
    %v114 = vld [vmem:[#allocation7 + $0x78] sm:$0xff]
    %v115 = vstv %s94
    %v116 = vmax.f32 %v115, %v99
    %v117 = vmax.f32 %v115, %v100
    %v118 = vmax.f32 %v115, %v101
    %v119 = vmax.f32 %v115, %v102
    %v120 = vmax.f32 %v115, %v103
    %v121 = vmax.f32 %v115, %v104
    %v122 = vmax.f32 %v115, %v105
    %v123 = vmax.f32 %v115, %v106
    %v124 = vmax.f32 %v115, %v107
    %v125 = vmax.f32 %v115, %v108
    %v126 = vmax.f32 %v115, %v109
    %v127 = vmax.f32 %v115, %v110
    %v128 = vmax.f32 %v115, %v111
    %v129 = vmax.f32 %v115, %v112
    %v130 = vmax.f32 %v115, %v113
    %v131 = vmax.f32 %v115, %v114
    %v132 = vstv %s95
    %v133 = vmin.f32 %v132, %v116
    %v134 = vmin.f32 %v132, %v117
    %v135 = vmin.f32 %v132, %v118
    %v136 = vmin.f32 %v132, %v119
    %v137 = vmin.f32 %v132, %v120
    %v138 = vmin.f32 %v132, %v121
    %v139 = vmin.f32 %v132, %v122
    %v140 = vmin.f32 %v132, %v123
    %v141 = vmin.f32 %v132, %v124
    %v142 = vmin.f32 %v132, %v125
    %v143 = vmin.f32 %v132, %v126
    %v144 = vmin.f32 %v132, %v127
    %v145 = vmin.f32 %v132, %v128
    %v146 = vmin.f32 %v132, %v129
    %v147 = vmin.f32 %v132, %v130
    %v148 = vmin.f32 %v132, %v131
    %v149 = vstv %s98
    %v150 = vmax.f32 %v149, %v99
    %v151 = vmax.f32 %v149, %v100
    %v152 = vmax.f32 %v149, %v101
    %v153 = vmax.f32 %v149, %v102
    %v154 = vmax.f32 %v149, %v103
    %v155 = vmax.f32 %v149, %v104
    %v156 = vmax.f32 %v149, %v105
    %v157 = vmax.f32 %v149, %v106
    %v158 = vmax.f32 %v149, %v107
    %v159 = vmax.f32 %v149, %v108
    %v160 = vmax.f32 %v149, %v109
    %v161 = vmax.f32 %v149, %v110
    %v162 = vmax.f32 %v149, %v111
    %v163 = vmax.f32 %v149, %v112
    %v164 = vmax.f32 %v149, %v113
    %v165 = vmax.f32 %v149, %v114
    %v166 = vstv %s97
    %v167 = vmin.f32 %v166, %v150
    %v168 = vmin.f32 %v166, %v151
    %v169 = vmin.f32 %v166, %v152
    %v170 = vmin.f32 %v166, %v153
    %v171 = vmin.f32 %v166, %v154
    %v172 = vmin.f32 %v166, %v155
    %v173 = vmin.f32 %v166, %v156
    %v174 = vmin.f32 %v166, %v157
    %v175 = vmin.f32 %v166, %v158
    %v176 = vmin.f32 %v166, %v159
    %v177 = vmin.f32 %v166, %v160
    %v178 = vmin.f32 %v166, %v161
    %v179 = vmin.f32 %v166, %v162
    %v180 = vmin.f32 %v166, %v163
    %v181 = vmin.f32 %v166, %v164
    %v182 = vmin.f32 %v166, %v165
    %v183 = vadd.f32 %v133, %v167
    %v184 = vadd.f32 %v134, %v168
    %v185 = vadd.f32 %v135, %v169
    %v186 = vadd.f32 %v136, %v170
    %v187 = vadd.f32 %v137, %v171
    %v188 = vadd.f32 %v138, %v172
    %v189 = vadd.f32 %v139, %v173
    %v190 = vadd.f32 %v140, %v174
    %v191 = vadd.f32 %v141, %v175
    %v192 = vadd.f32 %v142, %v176
    %v193 = vadd.f32 %v143, %v177
    %v194 = vadd.f32 %v144, %v178
    %v195 = vadd.f32 %v145, %v179
    %v196 = vadd.f32 %v146, %v180
    %v197 = vadd.f32 %v147, %v181
    %v198 = vadd.f32 %v148, %v182
    %v199 = vsub.f32 %v99, %v132
    %v200 = vsub.f32 %v100, %v132
    %v201 = vsub.f32 %v101, %v132
    %v202 = vsub.f32 %v102, %v132
    %v203 = vsub.f32 %v103, %v132
    %v204 = vsub.f32 %v104, %v132
    %v205 = vsub.f32 %v105, %v132
    %v206 = vsub.f32 %v106, %v132
    %v207 = vsub.f32 %v107, %v132
    %v208 = vsub.f32 %v108, %v132
    %v209 = vsub.f32 %v109, %v132
    %v210 = vsub.f32 %v110, %v132
    %v211 = vsub.f32 %v111, %v132
    %v212 = vsub.f32 %v112, %v132
    %v213 = vsub.f32 %v113, %v132
    %v214 = vsub.f32 %v114, %v132
    %v215 = vmax.f32 %v199, 0.0
    %v216 = vmax.f32 %v200, 0.0
    %v217 = vmax.f32 %v201, 0.0
    %v218 = vmax.f32 %v202, 0.0
    %v219 = vmax.f32 %v203, 0.0
    %v220 = vmax.f32 %v204, 0.0
    %v221 = vmax.f32 %v205, 0.0
    %v222 = vmax.f32 %v206, 0.0
    %v223 = vmax.f32 %v207, 0.0
    %v224 = vmax.f32 %v208, 0.0
    %v225 = vmax.f32 %v209, 0.0
    %v226 = vmax.f32 %v210, 0.0
    %v227 = vmax.f32 %v211, 0.0
    %v228 = vmax.f32 %v212, 0.0
    %v229 = vmax.f32 %v213, 0.0
    %v230 = vmax.f32 %v214, 0.0
    %v231 = vadd.f32 %v99, %v132
    %v232 = vadd.f32 %v100, %v132
    %v233 = vadd.f32 %v101, %v132
    %v234 = vadd.f32 %v102, %v132
    %v235 = vadd.f32 %v103, %v132
    %v236 = vadd.f32 %v104, %v132
    %v237 = vadd.f32 %v105, %v132
    %v238 = vadd.f32 %v106, %v132
    %v239 = vadd.f32 %v107, %v132
    %v240 = vadd.f32 %v108, %v132
    %v241 = vadd.f32 %v109, %v132
    %v242 = vadd.f32 %v110, %v132
    %v243 = vadd.f32 %v111, %v132
    %v244 = vadd.f32 %v112, %v132
    %v245 = vadd.f32 %v113, %v132
    %v246 = vadd.f32 %v114, %v132
    %v247 = vmin.f32 %v231, 0.0
    %v248 = vmin.f32 %v232, 0.0
    %v249 = vmin.f32 %v233, 0.0
    %v250 = vmin.f32 %v234, 0.0
    %v251 = vmin.f32 %v235, 0.0
    %v252 = vmin.f32 %v236, 0.0
    %v253 = vmin.f32 %v237, 0.0
    %v254 = vmin.f32 %v238, 0.0
    %v255 = vmin.f32 %v239, 0.0
    %v256 = vmin.f32 %v240, 0.0
    %v257 = vmin.f32 %v241, 0.0
    %v258 = vmin.f32 %v242, 0.0
    %v259 = vmin.f32 %v243, 0.0
    %v260 = vmin.f32 %v244, 0.0
    %v261 = vmin.f32 %v245, 0.0
    %v262 = vmin.f32 %v246, 0.0
    %v263 = vadd.f32 %v215, %v247
    %v264 = vadd.f32 %v216, %v248
    %v265 = vadd.f32 %v217, %v249
    %v266 = vadd.f32 %v218, %v250
    %v267 = vadd.f32 %v219, %v251
    %v268 = vadd.f32 %v220, %v252
    %v269 = vadd.f32 %v221, %v253
    %v270 = vadd.f32 %v222, %v254
    %v271 = vadd.f32 %v223, %v255
    %v272 = vadd.f32 %v224, %v256
    %v273 = vadd.f32 %v225, %v257
    %v274 = vadd.f32 %v226, %v258
    %v275 = vadd.f32 %v227, %v259
    %v276 = vadd.f32 %v228, %v260
    %v277 = vadd.f32 %v229, %v261
    %v278 = vadd.f32 %v230, %v262
    %v279 = vstv %s92
    %v280 = vmul.f32 %v279, %v183
    %v281 = vmul.f32 %v279, %v184
    %v282 = vmul.f32 %v279, %v185
    %v283 = vmul.f32 %v279, %v186
    %v284 = vmul.f32 %v279, %v187
    %v285 = vmul.f32 %v279, %v188
    %v286 = vmul.f32 %v279, %v189
    %v287 = vmul.f32 %v279, %v190
    %v288 = vmul.f32 %v279, %v191
    %v289 = vmul.f32 %v279, %v192
    %v290 = vmul.f32 %v279, %v193
    %v291 = vmul.f32 %v279, %v194
    %v292 = vmul.f32 %v279, %v195
    %v293 = vmul.f32 %v279, %v196
    %v294 = vmul.f32 %v279, %v197
    %v295 = vmul.f32 %v279, %v198
    %v296 = vstv %s93
    %v297 = vmul.f32 %v296, %v263
    %v298 = vmul.f32 %v296, %v264
    %v299 = vmul.f32 %v296, %v265
    %v300 = vmul.f32 %v296, %v266
    %v301 = vmul.f32 %v296, %v267
    %v302 = vmul.f32 %v296, %v268
    %v303 = vmul.f32 %v296, %v269
    %v304 = vmul.f32 %v296, %v270
    %v305 = vmul.f32 %v296, %v271
    %v306 = vmul.f32 %v296, %v272
    %v307 = vmul.f32 %v296, %v273
    %v308 = vmul.f32 %v296, %v274
    %v309 = vmul.f32 %v296, %v275
    %v310 = vmul.f32 %v296, %v276
    %v311 = vmul.f32 %v296, %v277
    %v312 = vmul.f32 %v296, %v278
    %v313 = vadd.f32 %v280, %v297
    %v314 = vadd.f32 %v281, %v298
    %v315 = vadd.f32 %v282, %v299
    %v316 = vadd.f32 %v283, %v300
    %v317 = vadd.f32 %v284, %v301
    %v318 = vadd.f32 %v285, %v302
    %v319 = vadd.f32 %v286, %v303
    %v320 = vadd.f32 %v287, %v304
    %v321 = vadd.f32 %v288, %v305
    %v322 = vadd.f32 %v289, %v306
    %v323 = vadd.f32 %v290, %v307
    %v324 = vadd.f32 %v291, %v308
    %v325 = vadd.f32 %v292, %v309
    %v326 = vadd.f32 %v293, %v310
    %v327 = vadd.f32 %v294, %v311
    %v328 = vadd.f32 %v295, %v312
    %v329 = vld [vmem:[%s5] sm:$0x1]
    %v331 = vlaneseq
    %v332 = vshrl.u32 %v331, 7
    %v333 = vsub.s32 0, %v332
    %v334 = vrot.slane %v329, %v333
    %v336 = vsub.f32 %v313, %v334
    %v337 = vsub.f32 %v314, %v334
    %v338 = vsub.f32 %v315, %v334
    %v339 = vsub.f32 %v316, %v334
    %v340 = vsub.f32 %v317, %v334
    %v341 = vsub.f32 %v318, %v334
    %v342 = vsub.f32 %v319, %v334
    %v343 = vsub.f32 %v320, %v334
    %v344 = vsub.f32 %v321, %v334
    %v345 = vsub.f32 %v322, %v334
    %v346 = vsub.f32 %v323, %v334
    %v347 = vsub.f32 %v324, %v334
    %v348 = vsub.f32 %v325, %v334
    %v349 = vsub.f32 %v326, %v334
    %v350 = vsub.f32 %v327, %v334
    %v351 = vsub.f32 %v328, %v334
    %v352 = vld [vmem:[#allocation10] sm:$0xf]
    %v353 = vld [vmem:[#allocation10 + $0x4] sm:$0xf]
    %v354 = vld [vmem:[#allocation10 + $0x8] sm:$0xf]
    %v355 = vld [vmem:[#allocation10 + $0xc] sm:$0xf]
    %v356 = vld [vmem:[#allocation10 + $0x10] sm:$0xf]
    %v357 = vld [vmem:[#allocation10 + $0x14] sm:$0xf]
    %v358 = vld [vmem:[#allocation10 + $0x18] sm:$0xf]
    %v359 = vld [vmem:[#allocation10 + $0x1c] sm:$0xf]
    %v360 = vld [vmem:[#allocation10 + $0x20] sm:$0xf]
    %v361 = vld [vmem:[#allocation10 + $0x24] sm:$0xf]
    %v362 = vld [vmem:[#allocation10 + $0x28] sm:$0xf]
    %v363 = vld [vmem:[#allocation10 + $0x2c] sm:$0xf]
    %v364 = vld [vmem:[#allocation10 + $0x30] sm:$0xf]
    %v365 = vld [vmem:[#allocation10 + $0x34] sm:$0xf]
    %v366 = vld [vmem:[#allocation10 + $0x38] sm:$0xf]
    %v367 = vld [vmem:[#allocation10 + $0x3c] sm:$0xf]
    %v368 = vpack.c.bf16 %v337, %v336
    %v369 = vpack.c.bf16 %v339, %v338
    %v370 = vpack.c.bf16 %v341, %v340
    %v371 = vpack.c.bf16 %v343, %v342
    %v372 = vpack.c.bf16 %v345, %v344
    %v373 = vpack.c.bf16 %v347, %v346
    %v374 = vpack.c.bf16 %v349, %v348
    %v375 = vpack.c.bf16 %v351, %v350
    %v392 = vunpack.c.l.b16 %v352
    %v393 = vunpack.c.l.b16 %v353
    %v394 = vunpack.c.l.b16 %v354
    %v395 = vunpack.c.l.b16 %v355
    %v396 = vunpack.c.l.b16 %v356
    %v397 = vunpack.c.l.b16 %v357
    %v398 = vunpack.c.l.b16 %v358
    %v399 = vunpack.c.l.b16 %v359
    %v400 = vunpack.c.l.b16 %v360
    %v401 = vunpack.c.l.b16 %v361
    %v402 = vunpack.c.l.b16 %v362
    %v403 = vunpack.c.l.b16 %v363
    %v404 = vunpack.c.l.b16 %v364
    %v405 = vunpack.c.l.b16 %v365
    %v406 = vunpack.c.l.b16 %v366
    %v407 = vunpack.c.l.b16 %v367
    %v408 = vpack.c.b16 %v393, %v392
    %v409 = vpack.c.b16 %v395, %v394
    %v410 = vpack.c.b16 %v397, %v396
    %v411 = vpack.c.b16 %v399, %v398
    %v412 = vpack.c.b16 %v401, %v400
    %v413 = vpack.c.b16 %v403, %v402
    %v414 = vpack.c.b16 %v405, %v404
    %v415 = vpack.c.b16 %v407, %v406
    %424 = vmatprep.subr.bf16.mxu0 0
    %425 = vmatpush1.bf16.msra.mxu0 %v368
    %426 = vmatprep.subr.bf16.mxu0 0
    %427 = vmatpush1.bf16.msra.mxu0 %v369
    %428 = vmatprep.subr.bf16.mxu0 0
    %429 = vmatpush1.bf16.msra.mxu0 %v370
    %430 = vmatprep.subr.bf16.mxu0 0
    %431 = vmatpush1.bf16.msra.mxu0 %v371
    %432 = vmatprep.subr.bf16.mxu0 0
    %433 = vmatpush1.bf16.msra.mxu0 %v372
    %434 = vmatprep.subr.bf16.mxu0 0
    %435 = vmatpush1.bf16.msra.mxu0 %v373
    %436 = vmatprep.subr.bf16.mxu0 0
    %437 = vmatpush1.bf16.msra.mxu0 %v374
    %438 = vmatprep.subr.bf16.mxu0 0
    %439 = vmatpush1.bf16.msra.mxu0 %v375
    %440 = vmatprep.subr.bf16.mxu0 0
    %441 = vmatpush1.bf16.msra.mxu0 0
    %442 = vmatprep.subr.bf16.mxu0 0
    %443 = vmatpush1.bf16.msra.mxu0 0
    %444 = vmatprep.subr.bf16.mxu0 0
    %445 = vmatpush1.bf16.msra.mxu0 0
    %446 = vmatprep.subr.bf16.mxu0 0
    %447 = vmatpush1.bf16.msra.mxu0 0
    %448 = vmatprep.subr.bf16.mxu0 0
    %449 = vmatpush1.bf16.msra.mxu0 0
    %450 = vmatprep.subr.bf16.mxu0 0
    %451 = vmatpush1.bf16.msra.mxu0 0
    %452 = vmatprep.subr.bf16.mxu0 0
    %453 = vmatpush1.bf16.msra.mxu0 0
    %454 = vmatprep.subr.bf16.mxu0 0
    %455 = vmatpush1.bf16.msra.mxu0 0
    %456 = vmatprep.mubr.bf16.mxu0 0
    %457 = vmatmul.mubr.bf16.gmra.mrb[0].mxu0 %v408
    %v458 = vpop.f32.mrb[0].mxu0
    %v459 = vadd.f32 0.0, %v458
    %v460 = vpop.f32.mrb[0].mxu0
    %v461 = vpop.f32.mrb[0].mxu0
    %v462 = vadd.f32 0.0, %v461
    %v463 = vpop.f32.mrb[0].mxu0
    %464 = vmatprep.mubr.bf16.mxu0 0
    %465 = vmatmul.mubr.bf16.gmra.mrb[0].mxu0 %v409
    %v466 = vpop.f32.mrb[0].mxu0
    %v467 = vadd.f32 0.0, %v466
    %v468 = vpop.f32.mrb[0].mxu0
    %v469 = vpop.f32.mrb[0].mxu0
    %v470 = vadd.f32 0.0, %v469
    %v471 = vpop.f32.mrb[0].mxu0
    %472 = vmatprep.mubr.bf16.mxu0 0
    %473 = vmatmul.mubr.bf16.gmra.mrb[0].mxu0 %v410
    %v474 = vpop.f32.mrb[0].mxu0
    %v475 = vadd.f32 0.0, %v474
    %v476 = vpop.f32.mrb[0].mxu0
    %v477 = vpop.f32.mrb[0].mxu0
    %v478 = vadd.f32 0.0, %v477
    %v479 = vpop.f32.mrb[0].mxu0
    %480 = vmatprep.mubr.bf16.mxu0 0
    %481 = vmatmul.mubr.bf16.gmra.mrb[0].mxu0 %v411
    %v482 = vpop.f32.mrb[0].mxu0
    %v483 = vadd.f32 0.0, %v482
    %v484 = vpop.f32.mrb[0].mxu0
    %v485 = vpop.f32.mrb[0].mxu0
    %v486 = vadd.f32 0.0, %v485
    %v487 = vpop.f32.mrb[0].mxu0
    %488 = vmatprep.mubr.bf16.mxu0 0
    %489 = vmatmul.mubr.bf16.gmra.mrb[0].mxu0 %v412
    %v490 = vpop.f32.mrb[0].mxu0
    %v491 = vadd.f32 0.0, %v490
    %v492 = vpop.f32.mrb[0].mxu0
    %v493 = vpop.f32.mrb[0].mxu0
    %v494 = vadd.f32 0.0, %v493
    %v495 = vpop.f32.mrb[0].mxu0
    %496 = vmatprep.mubr.bf16.mxu0 0
    %497 = vmatmul.mubr.bf16.gmra.mrb[0].mxu0 %v413
    %v498 = vpop.f32.mrb[0].mxu0
    %v499 = vadd.f32 0.0, %v498
    %v500 = vpop.f32.mrb[0].mxu0
    %v501 = vpop.f32.mrb[0].mxu0
    %v502 = vadd.f32 0.0, %v501
    %v503 = vpop.f32.mrb[0].mxu0
    %504 = vmatprep.mubr.bf16.mxu0 0
    %505 = vmatmul.mubr.bf16.gmra.mrb[0].mxu0 %v414
    %v506 = vpop.f32.mrb[0].mxu0
    %v507 = vadd.f32 0.0, %v506
    %v508 = vpop.f32.mrb[0].mxu0
    %v509 = vpop.f32.mrb[0].mxu0
    %v510 = vadd.f32 0.0, %v509
    %v511 = vpop.f32.mrb[0].mxu0
    %512 = vmatprep.mubr.bf16.mxu0 0
    %513 = vmatmul.mubr.bf16.gmra.mrb[0].mxu0 %v415
    %v514 = vpop.f32.mrb[0].mxu0
    %v515 = vadd.f32 0.0, %v514
    %v516 = vpop.f32.mrb[0].mxu0
    %v517 = vpop.f32.mrb[0].mxu0
    %v518 = vadd.f32 0.0, %v517
    %v519 = vpop.f32.mrb[0].mxu0
    %520 = vdwg.mxu0
    %521 = vst [vmem:[#allocation12] sm:$0xff] %v459
    %522 = vst [vmem:[#allocation12 + $0x8] sm:$0xff] %v462
    %523 = vst [vmem:[#allocation12 + $0x10] sm:$0xff] %v467
    %524 = vst [vmem:[#allocation12 + $0x18] sm:$0xff] %v470
    %525 = vst [vmem:[#allocation12 + $0x20] sm:$0xff] %v475
    %526 = vst [vmem:[#allocation12 + $0x28] sm:$0xff] %v478
    %527 = vst [vmem:[#allocation12 + $0x30] sm:$0xff] %v483
    %528 = vst [vmem:[#allocation12 + $0x38] sm:$0xff] %v486
    %529 = vst [vmem:[#allocation12 + $0x40] sm:$0xff] %v491
    %530 = vst [vmem:[#allocation12 + $0x48] sm:$0xff] %v494
    %531 = vst [vmem:[#allocation12 + $0x50] sm:$0xff] %v499
    %532 = vst [vmem:[#allocation12 + $0x58] sm:$0xff] %v502
    %533 = vst [vmem:[#allocation12 + $0x60] sm:$0xff] %v507
    %534 = vst [vmem:[#allocation12 + $0x68] sm:$0xff] %v510
    %535 = vst [vmem:[#allocation12 + $0x70] sm:$0xff] %v515
    %536 = vst [vmem:[#allocation12 + $0x78] sm:$0xff] %v518
    %v537 = vld [vmem:[#allocation12] sm:$0xff]
    %v538 = vld [vmem:[#allocation12 + $0x8] sm:$0xff]
    %v539 = vld [vmem:[#allocation12 + $0x10] sm:$0xff]
    %v540 = vld [vmem:[#allocation12 + $0x18] sm:$0xff]
    %v541 = vld [vmem:[#allocation12 + $0x20] sm:$0xff]
    %v542 = vld [vmem:[#allocation12 + $0x28] sm:$0xff]
    %v543 = vld [vmem:[#allocation12 + $0x30] sm:$0xff]
    %v544 = vld [vmem:[#allocation12 + $0x38] sm:$0xff]
    %v545 = vld [vmem:[#allocation12 + $0x40] sm:$0xff]
    %v546 = vld [vmem:[#allocation12 + $0x48] sm:$0xff]
    %v547 = vld [vmem:[#allocation12 + $0x50] sm:$0xff]
    %v548 = vld [vmem:[#allocation12 + $0x58] sm:$0xff]
    %v549 = vld [vmem:[#allocation12 + $0x60] sm:$0xff]
    %v550 = vld [vmem:[#allocation12 + $0x68] sm:$0xff]
    %v551 = vld [vmem:[#allocation12 + $0x70] sm:$0xff]
    %v552 = vld [vmem:[#allocation12 + $0x78] sm:$0xff]
    %v553 = vstv %s96
    %v554 = vmul.f32 %v553, %v537
    %v555 = vmul.f32 %v553, %v538
    %v556 = vmul.f32 %v553, %v539
    %v557 = vmul.f32 %v553, %v540
    %v558 = vmul.f32 %v553, %v541
    %v559 = vmul.f32 %v553, %v542
    %v560 = vmul.f32 %v553, %v543
    %v561 = vmul.f32 %v553, %v544
    %v562 = vmul.f32 %v553, %v545
    %v563 = vmul.f32 %v553, %v546
    %v564 = vmul.f32 %v553, %v547
    %v565 = vmul.f32 %v553, %v548
    %v566 = vmul.f32 %v553, %v549
    %v567 = vmul.f32 %v553, %v550
    %v568 = vmul.f32 %v553, %v551
    %v569 = vmul.f32 %v553, %v552
    %v570 = vld [vmem:[#allocation6] sm:$0xff]
    %v571 = vld [vmem:[#allocation6 + $0x8] sm:$0xff]
    %v572 = vld [vmem:[#allocation6 + $0x10] sm:$0xff]
    %v573 = vld [vmem:[#allocation6 + $0x18] sm:$0xff]
    %v574 = vld [vmem:[#allocation6 + $0x20] sm:$0xff]
    %v575 = vld [vmem:[#allocation6 + $0x28] sm:$0xff]
    %v576 = vld [vmem:[#allocation6 + $0x30] sm:$0xff]
    %v577 = vld [vmem:[#allocation6 + $0x38] sm:$0xff]
    %v578 = vld [vmem:[#allocation6 + $0x40] sm:$0xff]
    %v579 = vld [vmem:[#allocation6 + $0x48] sm:$0xff]
    %v580 = vld [vmem:[#allocation6 + $0x50] sm:$0xff]
    %v581 = vld [vmem:[#allocation6 + $0x58] sm:$0xff]
    %v582 = vld [vmem:[#allocation6 + $0x60] sm:$0xff]
    %v583 = vld [vmem:[#allocation6 + $0x68] sm:$0xff]
    %v584 = vld [vmem:[#allocation6 + $0x70] sm:$0xff]
    %v585 = vld [vmem:[#allocation6 + $0x78] sm:$0xff]
    %v586 = vstv %s91
    %v587 = vmul.f32 %v586, %v570
    %v588 = vmul.f32 %v586, %v571
    %v589 = vmul.f32 %v586, %v572
    %v590 = vmul.f32 %v586, %v573
    %v591 = vmul.f32 %v586, %v574
    %v592 = vmul.f32 %v586, %v575
    %v593 = vmul.f32 %v586, %v576
    %v594 = vmul.f32 %v586, %v577
    %v595 = vmul.f32 %v586, %v578
    %v596 = vmul.f32 %v586, %v579
    %v597 = vmul.f32 %v586, %v580
    %v598 = vmul.f32 %v586, %v581
    %v599 = vmul.f32 %v586, %v582
    %v600 = vmul.f32 %v586, %v583
    %v601 = vmul.f32 %v586, %v584
    %v602 = vmul.f32 %v586, %v585
    %v603 = vadd.f32 %v554, %v587
    %v604 = vadd.f32 %v555, %v588
    %v605 = vadd.f32 %v556, %v589
    %v606 = vadd.f32 %v557, %v590
    %v607 = vadd.f32 %v558, %v591
    %v608 = vadd.f32 %v559, %v592
    %v609 = vadd.f32 %v560, %v593
    %v610 = vadd.f32 %v561, %v594
    %v611 = vadd.f32 %v562, %v595
    %v612 = vadd.f32 %v563, %v596
    %v613 = vadd.f32 %v564, %v597
    %v614 = vadd.f32 %v565, %v598
    %v615 = vadd.f32 %v566, %v599
    %v616 = vadd.f32 %v567, %v600
    %v617 = vadd.f32 %v568, %v601
    %v618 = vadd.f32 %v569, %v602
    %v619 = vld [vmem:[#allocation9] sm:$0xf]
    %v620 = vld [vmem:[#allocation9 + $0x4] sm:$0xf]
    %v621 = vld [vmem:[#allocation9 + $0x8] sm:$0xf]
    %v622 = vld [vmem:[#allocation9 + $0xc] sm:$0xf]
    %v623 = vld [vmem:[#allocation9 + $0x10] sm:$0xf]
    %v624 = vld [vmem:[#allocation9 + $0x14] sm:$0xf]
    %v625 = vld [vmem:[#allocation9 + $0x18] sm:$0xf]
    %v626 = vld [vmem:[#allocation9 + $0x1c] sm:$0xf]
    %v627 = vld [vmem:[#allocation9 + $0x20] sm:$0xf]
    %v628 = vld [vmem:[#allocation9 + $0x24] sm:$0xf]
    %v629 = vld [vmem:[#allocation9 + $0x28] sm:$0xf]
    %v630 = vld [vmem:[#allocation9 + $0x2c] sm:$0xf]
    %v631 = vld [vmem:[#allocation9 + $0x30] sm:$0xf]
    %v632 = vld [vmem:[#allocation9 + $0x34] sm:$0xf]
    %v633 = vld [vmem:[#allocation9 + $0x38] sm:$0xf]
    %v634 = vld [vmem:[#allocation9 + $0x3c] sm:$0xf]
    %v635 = vpack.c.bf16 %v604, %v603
    %v636 = vpack.c.bf16 %v606, %v605
    %v637 = vpack.c.bf16 %v608, %v607
    %v638 = vpack.c.bf16 %v610, %v609
    %v639 = vpack.c.bf16 %v612, %v611
    %v640 = vpack.c.bf16 %v614, %v613
    %v641 = vpack.c.bf16 %v616, %v615
    %v642 = vpack.c.bf16 %v618, %v617
    %v659 = vunpack.c.l.b16 %v619
    %v660 = vunpack.c.l.b16 %v620
    %v661 = vunpack.c.l.b16 %v621
    %v662 = vunpack.c.l.b16 %v622
    %v663 = vunpack.c.l.b16 %v623
    %v664 = vunpack.c.l.b16 %v624
    %v665 = vunpack.c.l.b16 %v625
    %v666 = vunpack.c.l.b16 %v626
    %v667 = vunpack.c.l.b16 %v627
    %v668 = vunpack.c.l.b16 %v628
    %v669 = vunpack.c.l.b16 %v629
    %v670 = vunpack.c.l.b16 %v630
    %v671 = vunpack.c.l.b16 %v631
    %v672 = vunpack.c.l.b16 %v632
    %v673 = vunpack.c.l.b16 %v633
    %v674 = vunpack.c.l.b16 %v634
    %v675 = vpack.c.b16 %v660, %v659
    %v676 = vpack.c.b16 %v662, %v661
    %v677 = vpack.c.b16 %v664, %v663
    %v678 = vpack.c.b16 %v666, %v665
    %v679 = vpack.c.b16 %v668, %v667
    %v680 = vpack.c.b16 %v670, %v669
    %v681 = vpack.c.b16 %v672, %v671
    %v682 = vpack.c.b16 %v674, %v673
    %691 = vmatprep.subr.bf16.mxu0 0
    %692 = vmatpush1.bf16.msra.mxu0 %v635
    %693 = vmatprep.subr.bf16.mxu0 0
    %694 = vmatpush1.bf16.msra.mxu0 %v636
    %695 = vmatprep.subr.bf16.mxu0 0
    %696 = vmatpush1.bf16.msra.mxu0 %v637
    %697 = vmatprep.subr.bf16.mxu0 0
    %698 = vmatpush1.bf16.msra.mxu0 %v638
    %699 = vmatprep.subr.bf16.mxu0 0
    %700 = vmatpush1.bf16.msra.mxu0 %v639
    %701 = vmatprep.subr.bf16.mxu0 0
    %702 = vmatpush1.bf16.msra.mxu0 %v640
    %703 = vmatprep.subr.bf16.mxu0 0
    %704 = vmatpush1.bf16.msra.mxu0 %v641
    %705 = vmatprep.subr.bf16.mxu0 0
    %706 = vmatpush1.bf16.msra.mxu0 %v642
    %707 = vmatprep.subr.bf16.mxu0 0
    %708 = vmatpush1.bf16.msra.mxu0 0
    %709 = vmatprep.subr.bf16.mxu0 0
    %710 = vmatpush1.bf16.msra.mxu0 0
    %711 = vmatprep.subr.bf16.mxu0 0
    %712 = vmatpush1.bf16.msra.mxu0 0
    %713 = vmatprep.subr.bf16.mxu0 0
    %714 = vmatpush1.bf16.msra.mxu0 0
    %715 = vmatprep.subr.bf16.mxu0 0
    %716 = vmatpush1.bf16.msra.mxu0 0
    %717 = vmatprep.subr.bf16.mxu0 0
    %718 = vmatpush1.bf16.msra.mxu0 0
    %719 = vmatprep.subr.bf16.mxu0 0
    %720 = vmatpush1.bf16.msra.mxu0 0
    %721 = vmatprep.subr.bf16.mxu0 0
    %722 = vmatpush1.bf16.msra.mxu0 0
    %723 = vmatprep.mubr.bf16.mxu0 0
    %724 = vmatmul.mubr.bf16.gmra.mrb[0].mxu0 %v675
    %v725 = vpop.f32.mrb[0].mxu0
    %v726 = vadd.f32 0.0, %v725
    %v727 = vpop.f32.mrb[0].mxu0
    %v728 = vpop.f32.mrb[0].mxu0
    %v729 = vadd.f32 0.0, %v728
    %v730 = vpop.f32.mrb[0].mxu0
    %731 = vmatprep.mubr.bf16.mxu0 0
    %732 = vmatmul.mubr.bf16.gmra.mrb[0].mxu0 %v676
    %v733 = vpop.f32.mrb[0].mxu0
    %v734 = vadd.f32 0.0, %v733
    %v735 = vpop.f32.mrb[0].mxu0
    %v736 = vpop.f32.mrb[0].mxu0
    %v737 = vadd.f32 0.0, %v736
    %v738 = vpop.f32.mrb[0].mxu0
    %739 = vmatprep.mubr.bf16.mxu0 0
    %740 = vmatmul.mubr.bf16.gmra.mrb[0].mxu0 %v677
    %v741 = vpop.f32.mrb[0].mxu0
    %v742 = vadd.f32 0.0, %v741
    %v743 = vpop.f32.mrb[0].mxu0
    %v744 = vpop.f32.mrb[0].mxu0
    %v745 = vadd.f32 0.0, %v744
    %v746 = vpop.f32.mrb[0].mxu0
    %747 = vmatprep.mubr.bf16.mxu0 0
    %748 = vmatmul.mubr.bf16.gmra.mrb[0].mxu0 %v678
    %v749 = vpop.f32.mrb[0].mxu0
    %v750 = vadd.f32 0.0, %v749
    %v751 = vpop.f32.mrb[0].mxu0
    %v752 = vpop.f32.mrb[0].mxu0
    %v753 = vadd.f32 0.0, %v752
    %v754 = vpop.f32.mrb[0].mxu0
    %755 = vmatprep.mubr.bf16.mxu0 0
    %756 = vmatmul.mubr.bf16.gmra.mrb[0].mxu0 %v679
    %v757 = vpop.f32.mrb[0].mxu0
    %v758 = vadd.f32 0.0, %v757
    %v759 = vpop.f32.mrb[0].mxu0
    %v760 = vpop.f32.mrb[0].mxu0
    %v761 = vadd.f32 0.0, %v760
    %v762 = vpop.f32.mrb[0].mxu0
    %763 = vmatprep.mubr.bf16.mxu0 0
    %764 = vmatmul.mubr.bf16.gmra.mrb[0].mxu0 %v680
    %v765 = vpop.f32.mrb[0].mxu0
    %v766 = vadd.f32 0.0, %v765
    %v767 = vpop.f32.mrb[0].mxu0
    %v768 = vpop.f32.mrb[0].mxu0
    %v769 = vadd.f32 0.0, %v768
    %v770 = vpop.f32.mrb[0].mxu0
    %771 = vmatprep.mubr.bf16.mxu0 0
    %772 = vmatmul.mubr.bf16.gmra.mrb[0].mxu0 %v681
    %v773 = vpop.f32.mrb[0].mxu0
    %v774 = vadd.f32 0.0, %v773
    %v775 = vpop.f32.mrb[0].mxu0
    %v776 = vpop.f32.mrb[0].mxu0
    %v777 = vadd.f32 0.0, %v776
    %v778 = vpop.f32.mrb[0].mxu0
    %779 = vmatprep.mubr.bf16.mxu0 0
    %780 = vmatmul.mubr.bf16.gmra.mrb[0].mxu0 %v682
    %v781 = vpop.f32.mrb[0].mxu0
    %v782 = vadd.f32 0.0, %v781
    %v783 = vpop.f32.mrb[0].mxu0
    %v784 = vpop.f32.mrb[0].mxu0
    %v785 = vadd.f32 0.0, %v784
    %v786 = vpop.f32.mrb[0].mxu0
    %787 = vdwg.mxu0
    %v788 = vmax.f32 %v115, %v726
    %v789 = vmax.f32 %v115, %v729
    %v790 = vmax.f32 %v115, %v734
    %v791 = vmax.f32 %v115, %v737
    %v792 = vmax.f32 %v115, %v742
    %v793 = vmax.f32 %v115, %v745
    %v794 = vmax.f32 %v115, %v750
    %v795 = vmax.f32 %v115, %v753
    %v796 = vmax.f32 %v115, %v758
    %v797 = vmax.f32 %v115, %v761
    %v798 = vmax.f32 %v115, %v766
    %v799 = vmax.f32 %v115, %v769
    %v800 = vmax.f32 %v115, %v774
    %v801 = vmax.f32 %v115, %v777
    %v802 = vmax.f32 %v115, %v782
    %v803 = vmax.f32 %v115, %v785
    %v804 = vmin.f32 %v132, %v788
    %v805 = vmin.f32 %v132, %v789
    %v806 = vmin.f32 %v132, %v790
    %v807 = vmin.f32 %v132, %v791
    %v808 = vmin.f32 %v132, %v792
    %v809 = vmin.f32 %v132, %v793
    %v810 = vmin.f32 %v132, %v794
    %v811 = vmin.f32 %v132, %v795
    %v812 = vmin.f32 %v132, %v796
    %v813 = vmin.f32 %v132, %v797
    %v814 = vmin.f32 %v132, %v798
    %v815 = vmin.f32 %v132, %v799
    %v816 = vmin.f32 %v132, %v800
    %v817 = vmin.f32 %v132, %v801
    %v818 = vmin.f32 %v132, %v802
    %v819 = vmin.f32 %v132, %v803
    %v820 = vmax.f32 %v149, %v726
    %v821 = vmax.f32 %v149, %v729
    %v822 = vmax.f32 %v149, %v734
    %v823 = vmax.f32 %v149, %v737
    %v824 = vmax.f32 %v149, %v742
    %v825 = vmax.f32 %v149, %v745
    %v826 = vmax.f32 %v149, %v750
    %v827 = vmax.f32 %v149, %v753
    %v828 = vmax.f32 %v149, %v758
    %v829 = vmax.f32 %v149, %v761
    %v830 = vmax.f32 %v149, %v766
    %v831 = vmax.f32 %v149, %v769
    %v832 = vmax.f32 %v149, %v774
    %v833 = vmax.f32 %v149, %v777
    %v834 = vmax.f32 %v149, %v782
    %v835 = vmax.f32 %v149, %v785
    %v836 = vmin.f32 %v166, %v820
    %v837 = vmin.f32 %v166, %v821
    %v838 = vmin.f32 %v166, %v822
    %v839 = vmin.f32 %v166, %v823
    %v840 = vmin.f32 %v166, %v824
    %v841 = vmin.f32 %v166, %v825
    %v842 = vmin.f32 %v166, %v826
    %v843 = vmin.f32 %v166, %v827
    %v844 = vmin.f32 %v166, %v828
    %v845 = vmin.f32 %v166, %v829
    %v846 = vmin.f32 %v166, %v830
    %v847 = vmin.f32 %v166, %v831
    %v848 = vmin.f32 %v166, %v832
    %v849 = vmin.f32 %v166, %v833
    %v850 = vmin.f32 %v166, %v834
    %v851 = vmin.f32 %v166, %v835
    %v852 = vadd.f32 %v804, %v836
    %v853 = vadd.f32 %v805, %v837
    %v854 = vadd.f32 %v806, %v838
    %v855 = vadd.f32 %v807, %v839
    %v856 = vadd.f32 %v808, %v840
    %v857 = vadd.f32 %v809, %v841
    %v858 = vadd.f32 %v810, %v842
    %v859 = vadd.f32 %v811, %v843
    %v860 = vadd.f32 %v812, %v844
    %v861 = vadd.f32 %v813, %v845
    %v862 = vadd.f32 %v814, %v846
    %v863 = vadd.f32 %v815, %v847
    %v864 = vadd.f32 %v816, %v848
    %v865 = vadd.f32 %v817, %v849
    %v866 = vadd.f32 %v818, %v850
    %v867 = vadd.f32 %v819, %v851
    %v868 = vsub.f32 %v726, %v132
    %v869 = vsub.f32 %v729, %v132
    %v870 = vsub.f32 %v734, %v132
    %v871 = vsub.f32 %v737, %v132
    %v872 = vsub.f32 %v742, %v132
    %v873 = vsub.f32 %v745, %v132
    %v874 = vsub.f32 %v750, %v132
    %v875 = vsub.f32 %v753, %v132
    %v876 = vsub.f32 %v758, %v132
    %v877 = vsub.f32 %v761, %v132
    %v878 = vsub.f32 %v766, %v132
    %v879 = vsub.f32 %v769, %v132
    %v880 = vsub.f32 %v774, %v132
    %v881 = vsub.f32 %v777, %v132
    %v882 = vsub.f32 %v782, %v132
    %v883 = vsub.f32 %v785, %v132
    %v884 = vmax.f32 %v868, 0.0
    %v885 = vmax.f32 %v869, 0.0
    %v886 = vmax.f32 %v870, 0.0
    %v887 = vmax.f32 %v871, 0.0
    %v888 = vmax.f32 %v872, 0.0
    %v889 = vmax.f32 %v873, 0.0
    %v890 = vmax.f32 %v874, 0.0
    %v891 = vmax.f32 %v875, 0.0
    %v892 = vmax.f32 %v876, 0.0
    %v893 = vmax.f32 %v877, 0.0
    %v894 = vmax.f32 %v878, 0.0
    %v895 = vmax.f32 %v879, 0.0
    %v896 = vmax.f32 %v880, 0.0
    %v897 = vmax.f32 %v881, 0.0
    %v898 = vmax.f32 %v882, 0.0
    %v899 = vmax.f32 %v883, 0.0
    %v900 = vadd.f32 %v726, %v132
    %v901 = vadd.f32 %v729, %v132
    %v902 = vadd.f32 %v734, %v132
    %v903 = vadd.f32 %v737, %v132
    %v904 = vadd.f32 %v742, %v132
    %v905 = vadd.f32 %v745, %v132
    %v906 = vadd.f32 %v750, %v132
    %v907 = vadd.f32 %v753, %v132
    %v908 = vadd.f32 %v758, %v132
    %v909 = vadd.f32 %v761, %v132
    %v910 = vadd.f32 %v766, %v132
    %v911 = vadd.f32 %v769, %v132
    %v912 = vadd.f32 %v774, %v132
    %v913 = vadd.f32 %v777, %v132
    %v914 = vadd.f32 %v782, %v132
    %v915 = vadd.f32 %v785, %v132
    %v916 = vmin.f32 %v900, 0.0
    %v917 = vmin.f32 %v901, 0.0
    %v918 = vmin.f32 %v902, 0.0
    %v919 = vmin.f32 %v903, 0.0
    %v920 = vmin.f32 %v904, 0.0
    %v921 = vmin.f32 %v905, 0.0
    %v922 = vmin.f32 %v906, 0.0
    %v923 = vmin.f32 %v907, 0.0
    %v924 = vmin.f32 %v908, 0.0
    %v925 = vmin.f32 %v909, 0.0
    %v926 = vmin.f32 %v910, 0.0
    %v927 = vmin.f32 %v911, 0.0
    %v928 = vmin.f32 %v912, 0.0
    %v929 = vmin.f32 %v913, 0.0
    %v930 = vmin.f32 %v914, 0.0
    %v931 = vmin.f32 %v915, 0.0
    %v932 = vadd.f32 %v884, %v916
    %v933 = vadd.f32 %v885, %v917
    %v934 = vadd.f32 %v886, %v918
    %v935 = vadd.f32 %v887, %v919
    %v936 = vadd.f32 %v888, %v920
    %v937 = vadd.f32 %v889, %v921
    %v938 = vadd.f32 %v890, %v922
    %v939 = vadd.f32 %v891, %v923
    %v940 = vadd.f32 %v892, %v924
    %v941 = vadd.f32 %v893, %v925
    %v942 = vadd.f32 %v894, %v926
    %v943 = vadd.f32 %v895, %v927
    %v944 = vadd.f32 %v896, %v928
    %v945 = vadd.f32 %v897, %v929
    %v946 = vadd.f32 %v898, %v930
    %v947 = vadd.f32 %v899, %v931
    %v948 = vmul.f32 %v279, %v852
    %v949 = vmul.f32 %v279, %v853
    %v950 = vmul.f32 %v279, %v854
    %v951 = vmul.f32 %v279, %v855
    %v952 = vmul.f32 %v279, %v856
    %v953 = vmul.f32 %v279, %v857
    %v954 = vmul.f32 %v279, %v858
    %v955 = vmul.f32 %v279, %v859
    %v956 = vmul.f32 %v279, %v860
    %v957 = vmul.f32 %v279, %v861
    %v958 = vmul.f32 %v279, %v862
    %v959 = vmul.f32 %v279, %v863
    %v960 = vmul.f32 %v279, %v864
    %v961 = vmul.f32 %v279, %v865
    %v962 = vmul.f32 %v279, %v866
    %v963 = vmul.f32 %v279, %v867
    %v964 = vmul.f32 %v296, %v932
    %v965 = vmul.f32 %v296, %v933
    %v966 = vmul.f32 %v296, %v934
    %v967 = vmul.f32 %v296, %v935
    %v968 = vmul.f32 %v296, %v936
    %v969 = vmul.f32 %v296, %v937
    %v970 = vmul.f32 %v296, %v938
    %v971 = vmul.f32 %v296, %v939
    %v972 = vmul.f32 %v296, %v940
    %v973 = vmul.f32 %v296, %v941
    %v974 = vmul.f32 %v296, %v942
    %v975 = vmul.f32 %v296, %v943
    %v976 = vmul.f32 %v296, %v944
    %v977 = vmul.f32 %v296, %v945
    %v978 = vmul.f32 %v296, %v946
    %v979 = vmul.f32 %v296, %v947
    %v980 = vadd.f32 %v948, %v964
    %v981 = vadd.f32 %v949, %v965
    %v982 = vadd.f32 %v950, %v966
    %v983 = vadd.f32 %v951, %v967
    %v984 = vadd.f32 %v952, %v968
    %v985 = vadd.f32 %v953, %v969
    %v986 = vadd.f32 %v954, %v970
    %v987 = vadd.f32 %v955, %v971
    %v988 = vadd.f32 %v956, %v972
    %v989 = vadd.f32 %v957, %v973
    %v990 = vadd.f32 %v958, %v974
    %v991 = vadd.f32 %v959, %v975
    %v992 = vadd.f32 %v960, %v976
    %v993 = vadd.f32 %v961, %v977
    %v994 = vadd.f32 %v962, %v978
    %v995 = vadd.f32 %v963, %v979
    %v996 = vld [vmem:[%s5] sm:$0x1]
    %v998 = vlaneseq
    %v999 = vshrl.u32 %v998, 7
    %v1000 = vsub.s32 0, %v999
    %v1001 = vrot.slane %v996, %v1000
    %v1003 = vsub.f32 %v980, %v1001
    %v1004 = vsub.f32 %v981, %v1001
    %v1005 = vsub.f32 %v982, %v1001
    %v1006 = vsub.f32 %v983, %v1001
    %v1007 = vsub.f32 %v984, %v1001
    %v1008 = vsub.f32 %v985, %v1001
    %v1009 = vsub.f32 %v986, %v1001
    %v1010 = vsub.f32 %v987, %v1001
    %v1011 = vsub.f32 %v988, %v1001
    %v1012 = vsub.f32 %v989, %v1001
    %v1013 = vsub.f32 %v990, %v1001
    %v1014 = vsub.f32 %v991, %v1001
    %v1015 = vsub.f32 %v992, %v1001
    %v1016 = vsub.f32 %v993, %v1001
    %v1017 = vsub.f32 %v994, %v1001
    %v1018 = vsub.f32 %v995, %v1001
    %v1019 = vld [vmem:[#allocation10] sm:$0xf]
    %v1020 = vld [vmem:[#allocation10 + $0x4] sm:$0xf]
    %v1021 = vld [vmem:[#allocation10 + $0x8] sm:$0xf]
    %v1022 = vld [vmem:[#allocation10 + $0xc] sm:$0xf]
    %v1023 = vld [vmem:[#allocation10 + $0x10] sm:$0xf]
    %v1024 = vld [vmem:[#allocation10 + $0x14] sm:$0xf]
    %v1025 = vld [vmem:[#allocation10 + $0x18] sm:$0xf]
    %v1026 = vld [vmem:[#allocation10 + $0x1c] sm:$0xf]
    %v1027 = vld [vmem:[#allocation10 + $0x20] sm:$0xf]
    %v1028 = vld [vmem:[#allocation10 + $0x24] sm:$0xf]
    %v1029 = vld [vmem:[#allocation10 + $0x28] sm:$0xf]
    %v1030 = vld [vmem:[#allocation10 + $0x2c] sm:$0xf]
    %v1031 = vld [vmem:[#allocation10 + $0x30] sm:$0xf]
    %v1032 = vld [vmem:[#allocation10 + $0x34] sm:$0xf]
    %v1033 = vld [vmem:[#allocation10 + $0x38] sm:$0xf]
    %v1034 = vld [vmem:[#allocation10 + $0x3c] sm:$0xf]
    %v1035 = vpack.c.bf16 %v1004, %v1003
    %v1036 = vpack.c.bf16 %v1006, %v1005
    %v1037 = vpack.c.bf16 %v1008, %v1007
    %v1038 = vpack.c.bf16 %v1010, %v1009
    %v1039 = vpack.c.bf16 %v1012, %v1011
    %v1040 = vpack.c.bf16 %v1014, %v1013
    %v1041 = vpack.c.bf16 %v1016, %v1015
    %v1042 = vpack.c.bf16 %v1018, %v1017
    %v1059 = vunpack.c.l.b16 %v1019
    %v1060 = vunpack.c.l.b16 %v1020
    %v1061 = vunpack.c.l.b16 %v1021
    %v1062 = vunpack.c.l.b16 %v1022
    %v1063 = vunpack.c.l.b16 %v1023
    %v1064 = vunpack.c.l.b16 %v1024
    %v1065 = vunpack.c.l.b16 %v1025
    %v1066 = vunpack.c.l.b16 %v1026
    %v1067 = vunpack.c.l.b16 %v1027
    %v1068 = vunpack.c.l.b16 %v1028
    %v1069 = vunpack.c.l.b16 %v1029
    %v1070 = vunpack.c.l.b16 %v1030
    %v1071 = vunpack.c.l.b16 %v1031
    %v1072 = vunpack.c.l.b16 %v1032
    %v1073 = vunpack.c.l.b16 %v1033
    %v1074 = vunpack.c.l.b16 %v1034
    %v1075 = vpack.c.b16 %v1060, %v1059
    %v1076 = vpack.c.b16 %v1062, %v1061
    %v1077 = vpack.c.b16 %v1064, %v1063
    %v1078 = vpack.c.b16 %v1066, %v1065
    %v1079 = vpack.c.b16 %v1068, %v1067
    %v1080 = vpack.c.b16 %v1070, %v1069
    %v1081 = vpack.c.b16 %v1072, %v1071
    %v1082 = vpack.c.b16 %v1074, %v1073
    %1091 = vmatprep.subr.bf16.mxu0 0
    %1092 = vmatpush1.bf16.msra.mxu0 %v1035
    %1093 = vmatprep.subr.bf16.mxu0 0
    %1094 = vmatpush1.bf16.msra.mxu0 %v1036
    %1095 = vmatprep.subr.bf16.mxu0 0
    %1096 = vmatpush1.bf16.msra.mxu0 %v1037
    %1097 = vmatprep.subr.bf16.mxu0 0
    %1098 = vmatpush1.bf16.msra.mxu0 %v1038
    %1099 = vmatprep.subr.bf16.mxu0 0
    %1100 = vmatpush1.bf16.msra.mxu0 %v1039
    %1101 = vmatprep.subr.bf16.mxu0 0
    %1102 = vmatpush1.bf16.msra.mxu0 %v1040
    %1103 = vmatprep.subr.bf16.mxu0 0
    %1104 = vmatpush1.bf16.msra.mxu0 %v1041
    %1105 = vmatprep.subr.bf16.mxu0 0
    %1106 = vmatpush1.bf16.msra.mxu0 %v1042
    %1107 = vmatprep.subr.bf16.mxu0 0
    %1108 = vmatpush1.bf16.msra.mxu0 0
    %1109 = vmatprep.subr.bf16.mxu0 0
    %1110 = vmatpush1.bf16.msra.mxu0 0
    %1111 = vmatprep.subr.bf16.mxu0 0
    %1112 = vmatpush1.bf16.msra.mxu0 0
    %1113 = vmatprep.subr.bf16.mxu0 0
    %1114 = vmatpush1.bf16.msra.mxu0 0
    %1115 = vmatprep.subr.bf16.mxu0 0
    %1116 = vmatpush1.bf16.msra.mxu0 0
    %1117 = vmatprep.subr.bf16.mxu0 0
    %1118 = vmatpush1.bf16.msra.mxu0 0
    %1119 = vmatprep.subr.bf16.mxu0 0
    %1120 = vmatpush1.bf16.msra.mxu0 0
    %1121 = vmatprep.subr.bf16.mxu0 0
    %1122 = vmatpush1.bf16.msra.mxu0 0
    %1123 = vmatprep.mubr.bf16.mxu0 0
    %1124 = vmatmul.mubr.bf16.gmra.mrb[0].mxu0 %v1075
    %v1125 = vpop.f32.mrb[0].mxu0
    %v1126 = vadd.f32 0.0, %v1125
    %v1127 = vpop.f32.mrb[0].mxu0
    %v1128 = vpop.f32.mrb[0].mxu0
    %v1129 = vadd.f32 0.0, %v1128
    %v1130 = vpop.f32.mrb[0].mxu0
    %1131 = vmatprep.mubr.bf16.mxu0 0
    %1132 = vmatmul.mubr.bf16.gmra.mrb[0].mxu0 %v1076
    %v1133 = vpop.f32.mrb[0].mxu0
    %v1134 = vadd.f32 0.0, %v1133
    %v1135 = vpop.f32.mrb[0].mxu0
    %v1136 = vpop.f32.mrb[0].mxu0
    %v1137 = vadd.f32 0.0, %v1136
    %v1138 = vpop.f32.mrb[0].mxu0
    %1139 = vmatprep.mubr.bf16.mxu0 0
    %1140 = vmatmul.mubr.bf16.gmra.mrb[0].mxu0 %v1077
    %v1141 = vpop.f32.mrb[0].mxu0
    %v1142 = vadd.f32 0.0, %v1141
    %v1143 = vpop.f32.mrb[0].mxu0
    %v1144 = vpop.f32.mrb[0].mxu0
    %v1145 = vadd.f32 0.0, %v1144
    %v1146 = vpop.f32.mrb[0].mxu0
    %1147 = vmatprep.mubr.bf16.mxu0 0
    %1148 = vmatmul.mubr.bf16.gmra.mrb[0].mxu0 %v1078
    %v1149 = vpop.f32.mrb[0].mxu0
    %v1150 = vadd.f32 0.0, %v1149
    %v1151 = vpop.f32.mrb[0].mxu0
    %v1152 = vpop.f32.mrb[0].mxu0
    %v1153 = vadd.f32 0.0, %v1152
    %v1154 = vpop.f32.mrb[0].mxu0
    %1155 = vmatprep.mubr.bf16.mxu0 0
    %1156 = vmatmul.mubr.bf16.gmra.mrb[0].mxu0 %v1079
    %v1157 = vpop.f32.mrb[0].mxu0
    %v1158 = vadd.f32 0.0, %v1157
    %v1159 = vpop.f32.mrb[0].mxu0
    %v1160 = vpop.f32.mrb[0].mxu0
    %v1161 = vadd.f32 0.0, %v1160
    %v1162 = vpop.f32.mrb[0].mxu0
    %1163 = vmatprep.mubr.bf16.mxu0 0
    %1164 = vmatmul.mubr.bf16.gmra.mrb[0].mxu0 %v1080
    %v1165 = vpop.f32.mrb[0].mxu0
    %v1166 = vadd.f32 0.0, %v1165
    %v1167 = vpop.f32.mrb[0].mxu0
    %v1168 = vpop.f32.mrb[0].mxu0
    %v1169 = vadd.f32 0.0, %v1168
    %v1170 = vpop.f32.mrb[0].mxu0
    %1171 = vmatprep.mubr.bf16.mxu0 0
    %1172 = vmatmul.mubr.bf16.gmra.mrb[0].mxu0 %v1081
    %v1173 = vpop.f32.mrb[0].mxu0
    %v1174 = vadd.f32 0.0, %v1173
    %v1175 = vpop.f32.mrb[0].mxu0
    %v1176 = vpop.f32.mrb[0].mxu0
    %v1177 = vadd.f32 0.0, %v1176
    %v1178 = vpop.f32.mrb[0].mxu0
    %1179 = vmatprep.mubr.bf16.mxu0 0
    %1180 = vmatmul.mubr.bf16.gmra.mrb[0].mxu0 %v1082
    %v1181 = vpop.f32.mrb[0].mxu0
    %v1182 = vadd.f32 0.0, %v1181
    %v1183 = vpop.f32.mrb[0].mxu0
    %v1184 = vpop.f32.mrb[0].mxu0
    %v1185 = vadd.f32 0.0, %v1184
    %v1186 = vpop.f32.mrb[0].mxu0
    %1187 = vdwg.mxu0
    %s1188 = scalar_lea.vmem [#allocation12], 128
    %1189 = vst [vmem:[%s1188] sm:$0xff] %v1126
    %1190 = vst [vmem:[%s1188 + $0x8] sm:$0xff] %v1129
    %1191 = vst [vmem:[%s1188 + $0x10] sm:$0xff] %v1134
    %1192 = vst [vmem:[%s1188 + $0x18] sm:$0xff] %v1137
    %1193 = vst [vmem:[%s1188 + $0x20] sm:$0xff] %v1142
    %1194 = vst [vmem:[%s1188 + $0x28] sm:$0xff] %v1145
    %1195 = vst [vmem:[%s1188 + $0x30] sm:$0xff] %v1150
    %1196 = vst [vmem:[%s1188 + $0x38] sm:$0xff] %v1153
    %1197 = vst [vmem:[%s1188 + $0x40] sm:$0xff] %v1158
    %1198 = vst [vmem:[%s1188 + $0x48] sm:$0xff] %v1161
    %1199 = vst [vmem:[%s1188 + $0x50] sm:$0xff] %v1166
    %1200 = vst [vmem:[%s1188 + $0x58] sm:$0xff] %v1169
    %1201 = vst [vmem:[%s1188 + $0x60] sm:$0xff] %v1174
    %1202 = vst [vmem:[%s1188 + $0x68] sm:$0xff] %v1177
    %1203 = vst [vmem:[%s1188 + $0x70] sm:$0xff] %v1182
    %1204 = vst [vmem:[%s1188 + $0x78] sm:$0xff] %v1185
    %v1205 = vld [vmem:[%s1188] sm:$0xff]
    %v1206 = vld [vmem:[%s1188 + $0x8] sm:$0xff]
    %v1207 = vld [vmem:[%s1188 + $0x10] sm:$0xff]
    %v1208 = vld [vmem:[%s1188 + $0x18] sm:$0xff]
    %v1209 = vld [vmem:[%s1188 + $0x20] sm:$0xff]
    %v1210 = vld [vmem:[%s1188 + $0x28] sm:$0xff]
    %v1211 = vld [vmem:[%s1188 + $0x30] sm:$0xff]
    %v1212 = vld [vmem:[%s1188 + $0x38] sm:$0xff]
    %v1213 = vld [vmem:[%s1188 + $0x40] sm:$0xff]
    %v1214 = vld [vmem:[%s1188 + $0x48] sm:$0xff]
    %v1215 = vld [vmem:[%s1188 + $0x50] sm:$0xff]
    %v1216 = vld [vmem:[%s1188 + $0x58] sm:$0xff]
    %v1217 = vld [vmem:[%s1188 + $0x60] sm:$0xff]
    %v1218 = vld [vmem:[%s1188 + $0x68] sm:$0xff]
    %v1219 = vld [vmem:[%s1188 + $0x70] sm:$0xff]
    %v1220 = vld [vmem:[%s1188 + $0x78] sm:$0xff]
    %v1221 = vmul.f32 %v553, %v1205
    %v1222 = vmul.f32 %v553, %v1206
    %v1223 = vmul.f32 %v553, %v1207
    %v1224 = vmul.f32 %v553, %v1208
    %v1225 = vmul.f32 %v553, %v1209
    %v1226 = vmul.f32 %v553, %v1210
    %v1227 = vmul.f32 %v553, %v1211
    %v1228 = vmul.f32 %v553, %v1212
    %v1229 = vmul.f32 %v553, %v1213
    %v1230 = vmul.f32 %v553, %v1214
    %v1231 = vmul.f32 %v553, %v1215
    %v1232 = vmul.f32 %v553, %v1216
    %v1233 = vmul.f32 %v553, %v1217
    %v1234 = vmul.f32 %v553, %v1218
    %v1235 = vmul.f32 %v553, %v1219
    %v1236 = vmul.f32 %v553, %v1220
    %v1237 = vld [vmem:[#allocation6] sm:$0xff]
    %v1238 = vld [vmem:[#allocation6 + $0x8] sm:$0xff]
    %v1239 = vld [vmem:[#allocation6 + $0x10] sm:$0xff]
    %v1240 = vld [vmem:[#allocation6 + $0x18] sm:$0xff]
    %v1241 = vld [vmem:[#allocation6 + $0x20] sm:$0xff]
    %v1242 = vld [vmem:[#allocation6 + $0x28] sm:$0xff]
    %v1243 = vld [vmem:[#allocation6 + $0x30] sm:$0xff]
    %v1244 = vld [vmem:[#allocation6 + $0x38] sm:$0xff]
    %v1245 = vld [vmem:[#allocation6 + $0x40] sm:$0xff]
    %v1246 = vld [vmem:[#allocation6 + $0x48] sm:$0xff]
    %v1247 = vld [vmem:[#allocation6 + $0x50] sm:$0xff]
    %v1248 = vld [vmem:[#allocation6 + $0x58] sm:$0xff]
    %v1249 = vld [vmem:[#allocation6 + $0x60] sm:$0xff]
    %v1250 = vld [vmem:[#allocation6 + $0x68] sm:$0xff]
    %v1251 = vld [vmem:[#allocation6 + $0x70] sm:$0xff]
    %v1252 = vld [vmem:[#allocation6 + $0x78] sm:$0xff]
    %v1253 = vmul.f32 %v586, %v1237
    %v1254 = vmul.f32 %v586, %v1238
    %v1255 = vmul.f32 %v586, %v1239
    %v1256 = vmul.f32 %v586, %v1240
    %v1257 = vmul.f32 %v586, %v1241
    %v1258 = vmul.f32 %v586, %v1242
    %v1259 = vmul.f32 %v586, %v1243
    %v1260 = vmul.f32 %v586, %v1244
    %v1261 = vmul.f32 %v586, %v1245
    %v1262 = vmul.f32 %v586, %v1246
    %v1263 = vmul.f32 %v586, %v1247
    %v1264 = vmul.f32 %v586, %v1248
    %v1265 = vmul.f32 %v586, %v1249
    %v1266 = vmul.f32 %v586, %v1250
    %v1267 = vmul.f32 %v586, %v1251
    %v1268 = vmul.f32 %v586, %v1252
    %v1269 = vadd.f32 %v1221, %v1253
    %v1270 = vadd.f32 %v1222, %v1254
    %v1271 = vadd.f32 %v1223, %v1255
    %v1272 = vadd.f32 %v1224, %v1256
    %v1273 = vadd.f32 %v1225, %v1257
    %v1274 = vadd.f32 %v1226, %v1258
    %v1275 = vadd.f32 %v1227, %v1259
    %v1276 = vadd.f32 %v1228, %v1260
    %v1277 = vadd.f32 %v1229, %v1261
    %v1278 = vadd.f32 %v1230, %v1262
    %v1279 = vadd.f32 %v1231, %v1263
    %v1280 = vadd.f32 %v1232, %v1264
    %v1281 = vadd.f32 %v1233, %v1265
    %v1282 = vadd.f32 %v1234, %v1266
    %v1283 = vadd.f32 %v1235, %v1267
    %v1284 = vadd.f32 %v1236, %v1268
    %v1285 = vld [vmem:[#allocation9] sm:$0xf]
    %v1286 = vld [vmem:[#allocation9 + $0x4] sm:$0xf]
    %v1287 = vld [vmem:[#allocation9 + $0x8] sm:$0xf]
    %v1288 = vld [vmem:[#allocation9 + $0xc] sm:$0xf]
    %v1289 = vld [vmem:[#allocation9 + $0x10] sm:$0xf]
    %v1290 = vld [vmem:[#allocation9 + $0x14] sm:$0xf]
    %v1291 = vld [vmem:[#allocation9 + $0x18] sm:$0xf]
    %v1292 = vld [vmem:[#allocation9 + $0x1c] sm:$0xf]
    %v1293 = vld [vmem:[#allocation9 + $0x20] sm:$0xf]
    %v1294 = vld [vmem:[#allocation9 + $0x24] sm:$0xf]
    %v1295 = vld [vmem:[#allocation9 + $0x28] sm:$0xf]
    %v1296 = vld [vmem:[#allocation9 + $0x2c] sm:$0xf]
    %v1297 = vld [vmem:[#allocation9 + $0x30] sm:$0xf]
    %v1298 = vld [vmem:[#allocation9 + $0x34] sm:$0xf]
    %v1299 = vld [vmem:[#allocation9 + $0x38] sm:$0xf]
    %v1300 = vld [vmem:[#allocation9 + $0x3c] sm:$0xf]
    %v1301 = vpack.c.bf16 %v1270, %v1269
    %v1302 = vpack.c.bf16 %v1272, %v1271
    %v1303 = vpack.c.bf16 %v1274, %v1273
    %v1304 = vpack.c.bf16 %v1276, %v1275
    %v1305 = vpack.c.bf16 %v1278, %v1277
    %v1306 = vpack.c.bf16 %v1280, %v1279
    %v1307 = vpack.c.bf16 %v1282, %v1281
    %v1308 = vpack.c.bf16 %v1284, %v1283
    %v1325 = vunpack.c.l.b16 %v1285
    %v1326 = vunpack.c.l.b16 %v1286
    %v1327 = vunpack.c.l.b16 %v1287
    %v1328 = vunpack.c.l.b16 %v1288
    %v1329 = vunpack.c.l.b16 %v1289
    %v1330 = vunpack.c.l.b16 %v1290
    %v1331 = vunpack.c.l.b16 %v1291
    %v1332 = vunpack.c.l.b16 %v1292
    %v1333 = vunpack.c.l.b16 %v1293
    %v1334 = vunpack.c.l.b16 %v1294
    %v1335 = vunpack.c.l.b16 %v1295
    %v1336 = vunpack.c.l.b16 %v1296
    %v1337 = vunpack.c.l.b16 %v1297
    %v1338 = vunpack.c.l.b16 %v1298
    %v1339 = vunpack.c.l.b16 %v1299
    %v1340 = vunpack.c.l.b16 %v1300
    %v1341 = vpack.c.b16 %v1326, %v1325
    %v1342 = vpack.c.b16 %v1328, %v1327
    %v1343 = vpack.c.b16 %v1330, %v1329
    %v1344 = vpack.c.b16 %v1332, %v1331
    %v1345 = vpack.c.b16 %v1334, %v1333
    %v1346 = vpack.c.b16 %v1336, %v1335
    %v1347 = vpack.c.b16 %v1338, %v1337
    %v1348 = vpack.c.b16 %v1340, %v1339
    %1357 = vmatprep.subr.bf16.mxu0 0
    %1358 = vmatpush1.bf16.msra.mxu0 %v1301
    %1359 = vmatprep.subr.bf16.mxu0 0
    %1360 = vmatpush1.bf16.msra.mxu0 %v1302
    %1361 = vmatprep.subr.bf16.mxu0 0
    %1362 = vmatpush1.bf16.msra.mxu0 %v1303
    %1363 = vmatprep.subr.bf16.mxu0 0
    %1364 = vmatpush1.bf16.msra.mxu0 %v1304
    %1365 = vmatprep.subr.bf16.mxu0 0
    %1366 = vmatpush1.bf16.msra.mxu0 %v1305
    %1367 = vmatprep.subr.bf16.mxu0 0
    %1368 = vmatpush1.bf16.msra.mxu0 %v1306
    %1369 = vmatprep.subr.bf16.mxu0 0
    %1370 = vmatpush1.bf16.msra.mxu0 %v1307
    %1371 = vmatprep.subr.bf16.mxu0 0
    %1372 = vmatpush1.bf16.msra.mxu0 %v1308
    %1373 = vmatprep.subr.bf16.mxu0 0
    %1374 = vmatpush1.bf16.msra.mxu0 0
    %1375 = vmatprep.subr.bf16.mxu0 0
    %1376 = vmatpush1.bf16.msra.mxu0 0
    %1377 = vmatprep.subr.bf16.mxu0 0
    %1378 = vmatpush1.bf16.msra.mxu0 0
    %1379 = vmatprep.subr.bf16.mxu0 0
    %1380 = vmatpush1.bf16.msra.mxu0 0
    %1381 = vmatprep.subr.bf16.mxu0 0
    %1382 = vmatpush1.bf16.msra.mxu0 0
    %1383 = vmatprep.subr.bf16.mxu0 0
    %1384 = vmatpush1.bf16.msra.mxu0 0
    %1385 = vmatprep.subr.bf16.mxu0 0
    %1386 = vmatpush1.bf16.msra.mxu0 0
    %1387 = vmatprep.subr.bf16.mxu0 0
    %1388 = vmatpush1.bf16.msra.mxu0 0
    %1389 = vmatprep.mubr.bf16.mxu0 0
    %1390 = vmatmul.mubr.bf16.gmra.mrb[0].mxu0 %v1341
    %v1391 = vpop.f32.mrb[0].mxu0
    %v1392 = vadd.f32 0.0, %v1391
    %v1393 = vpop.f32.mrb[0].mxu0
    %v1394 = vpop.f32.mrb[0].mxu0
    %v1395 = vadd.f32 0.0, %v1394
    %v1396 = vpop.f32.mrb[0].mxu0
    %1397 = vmatprep.mubr.bf16.mxu0 0
    %1398 = vmatmul.mubr.bf16.gmra.mrb[0].mxu0 %v1342
    %v1399 = vpop.f32.mrb[0].mxu0
    %v1400 = vadd.f32 0.0, %v1399
    %v1401 = vpop.f32.mrb[0].mxu0
    %v1402 = vpop.f32.mrb[0].mxu0
    %v1403 = vadd.f32 0.0, %v1402
    %v1404 = vpop.f32.mrb[0].mxu0
    %1405 = vmatprep.mubr.bf16.mxu0 0
    %1406 = vmatmul.mubr.bf16.gmra.mrb[0].mxu0 %v1343
    %v1407 = vpop.f32.mrb[0].mxu0
    %v1408 = vadd.f32 0.0, %v1407
    %v1409 = vpop.f32.mrb[0].mxu0
    %v1410 = vpop.f32.mrb[0].mxu0
    %v1411 = vadd.f32 0.0, %v1410
    %v1412 = vpop.f32.mrb[0].mxu0
    %1413 = vmatprep.mubr.bf16.mxu0 0
    %1414 = vmatmul.mubr.bf16.gmra.mrb[0].mxu0 %v1344
    %v1415 = vpop.f32.mrb[0].mxu0
    %v1416 = vadd.f32 0.0, %v1415
    %v1417 = vpop.f32.mrb[0].mxu0
    %v1418 = vpop.f32.mrb[0].mxu0
    %v1419 = vadd.f32 0.0, %v1418
    %v1420 = vpop.f32.mrb[0].mxu0
    %1421 = vmatprep.mubr.bf16.mxu0 0
    %1422 = vmatmul.mubr.bf16.gmra.mrb[0].mxu0 %v1345
    %v1423 = vpop.f32.mrb[0].mxu0
    %v1424 = vadd.f32 0.0, %v1423
    %v1425 = vpop.f32.mrb[0].mxu0
    %v1426 = vpop.f32.mrb[0].mxu0
    %v1427 = vadd.f32 0.0, %v1426
    %v1428 = vpop.f32.mrb[0].mxu0
    %1429 = vmatprep.mubr.bf16.mxu0 0
    %1430 = vmatmul.mubr.bf16.gmra.mrb[0].mxu0 %v1346
    %v1431 = vpop.f32.mrb[0].mxu0
    %v1432 = vadd.f32 0.0, %v1431
    %v1433 = vpop.f32.mrb[0].mxu0
    %v1434 = vpop.f32.mrb[0].mxu0
    %v1435 = vadd.f32 0.0, %v1434
    %v1436 = vpop.f32.mrb[0].mxu0
    %1437 = vmatprep.mubr.bf16.mxu0 0
    %1438 = vmatmul.mubr.bf16.gmra.mrb[0].mxu0 %v1347
    %v1439 = vpop.f32.mrb[0].mxu0
    %v1440 = vadd.f32 0.0, %v1439
    %v1441 = vpop.f32.mrb[0].mxu0
    %v1442 = vpop.f32.mrb[0].mxu0
    %v1443 = vadd.f32 0.0, %v1442
    %v1444 = vpop.f32.mrb[0].mxu0
    %1445 = vmatprep.mubr.bf16.mxu0 0
    %1446 = vmatmul.mubr.bf16.gmra.mrb[0].mxu0 %v1348
    %v1447 = vpop.f32.mrb[0].mxu0
    %v1448 = vadd.f32 0.0, %v1447
    %v1449 = vpop.f32.mrb[0].mxu0
    %v1450 = vpop.f32.mrb[0].mxu0
    %v1451 = vadd.f32 0.0, %v1450
    %v1452 = vpop.f32.mrb[0].mxu0
    %1453 = vdwg.mxu0
    %v1454 = vmax.f32 %v115, %v1392
    %v1455 = vmax.f32 %v115, %v1395
    %v1456 = vmax.f32 %v115, %v1400
    %v1457 = vmax.f32 %v115, %v1403
    %v1458 = vmax.f32 %v115, %v1408
    %v1459 = vmax.f32 %v115, %v1411
    %v1460 = vmax.f32 %v115, %v1416
    %v1461 = vmax.f32 %v115, %v1419
    %v1462 = vmax.f32 %v115, %v1424
    %v1463 = vmax.f32 %v115, %v1427
    %v1464 = vmax.f32 %v115, %v1432
    %v1465 = vmax.f32 %v115, %v1435
    %v1466 = vmax.f32 %v115, %v1440
    %v1467 = vmax.f32 %v115, %v1443
    %v1468 = vmax.f32 %v115, %v1448
    %v1469 = vmax.f32 %v115, %v1451
    %v1470 = vmin.f32 %v132, %v1454
    %v1471 = vmin.f32 %v132, %v1455
    %v1472 = vmin.f32 %v132, %v1456
    %v1473 = vmin.f32 %v132, %v1457
    %v1474 = vmin.f32 %v132, %v1458
    %v1475 = vmin.f32 %v132, %v1459
    %v1476 = vmin.f32 %v132, %v1460
    %v1477 = vmin.f32 %v132, %v1461
    %v1478 = vmin.f32 %v132, %v1462
    %v1479 = vmin.f32 %v132, %v1463
    %v1480 = vmin.f32 %v132, %v1464
    %v1481 = vmin.f32 %v132, %v1465
    %v1482 = vmin.f32 %v132, %v1466
    %v1483 = vmin.f32 %v132, %v1467
    %v1484 = vmin.f32 %v132, %v1468
    %v1485 = vmin.f32 %v132, %v1469
    %v1486 = vmax.f32 %v149, %v1392
    %v1487 = vmax.f32 %v149, %v1395
    %v1488 = vmax.f32 %v149, %v1400
    %v1489 = vmax.f32 %v149, %v1403
    %v1490 = vmax.f32 %v149, %v1408
    %v1491 = vmax.f32 %v149, %v1411
    %v1492 = vmax.f32 %v149, %v1416
    %v1493 = vmax.f32 %v149, %v1419
    %v1494 = vmax.f32 %v149, %v1424
    %v1495 = vmax.f32 %v149, %v1427
    %v1496 = vmax.f32 %v149, %v1432
    %v1497 = vmax.f32 %v149, %v1435
    %v1498 = vmax.f32 %v149, %v1440
    %v1499 = vmax.f32 %v149, %v1443
    %v1500 = vmax.f32 %v149, %v1448
    %v1501 = vmax.f32 %v149, %v1451
    %v1502 = vmin.f32 %v166, %v1486
    %v1503 = vmin.f32 %v166, %v1487
    %v1504 = vmin.f32 %v166, %v1488
    %v1505 = vmin.f32 %v166, %v1489
    %v1506 = vmin.f32 %v166, %v1490
    %v1507 = vmin.f32 %v166, %v1491
    %v1508 = vmin.f32 %v166, %v1492
    %v1509 = vmin.f32 %v166, %v1493
    %v1510 = vmin.f32 %v166, %v1494
    %v1511 = vmin.f32 %v166, %v1495
    %v1512 = vmin.f32 %v166, %v1496
    %v1513 = vmin.f32 %v166, %v1497
    %v1514 = vmin.f32 %v166, %v1498
    %v1515 = vmin.f32 %v166, %v1499
    %v1516 = vmin.f32 %v166, %v1500
    %v1517 = vmin.f32 %v166, %v1501
    %v1518 = vadd.f32 %v1470, %v1502
    %v1519 = vadd.f32 %v1471, %v1503
    %v1520 = vadd.f32 %v1472, %v1504
    %v1521 = vadd.f32 %v1473, %v1505
    %v1522 = vadd.f32 %v1474, %v1506
    %v1523 = vadd.f32 %v1475, %v1507
    %v1524 = vadd.f32 %v1476, %v1508
    %v1525 = vadd.f32 %v1477, %v1509
    %v1526 = vadd.f32 %v1478, %v1510
    %v1527 = vadd.f32 %v1479, %v1511
    %v1528 = vadd.f32 %v1480, %v1512
    %v1529 = vadd.f32 %v1481, %v1513
    %v1530 = vadd.f32 %v1482, %v1514
    %v1531 = vadd.f32 %v1483, %v1515
    %v1532 = vadd.f32 %v1484, %v1516
    %v1533 = vadd.f32 %v1485, %v1517
    %v1534 = vsub.f32 %v1392, %v132
    %v1535 = vsub.f32 %v1395, %v132
    %v1536 = vsub.f32 %v1400, %v132
    %v1537 = vsub.f32 %v1403, %v132
    %v1538 = vsub.f32 %v1408, %v132
    %v1539 = vsub.f32 %v1411, %v132
    %v1540 = vsub.f32 %v1416, %v132
    %v1541 = vsub.f32 %v1419, %v132
    %v1542 = vsub.f32 %v1424, %v132
    %v1543 = vsub.f32 %v1427, %v132
    %v1544 = vsub.f32 %v1432, %v132
    %v1545 = vsub.f32 %v1435, %v132
    %v1546 = vsub.f32 %v1440, %v132
    %v1547 = vsub.f32 %v1443, %v132
    %v1548 = vsub.f32 %v1448, %v132
    %v1549 = vsub.f32 %v1451, %v132
    %v1550 = vmax.f32 %v1534, 0.0
    %v1551 = vmax.f32 %v1535, 0.0
    %v1552 = vmax.f32 %v1536, 0.0
    %v1553 = vmax.f32 %v1537, 0.0
    %v1554 = vmax.f32 %v1538, 0.0
    %v1555 = vmax.f32 %v1539, 0.0
    %v1556 = vmax.f32 %v1540, 0.0
    %v1557 = vmax.f32 %v1541, 0.0
    %v1558 = vmax.f32 %v1542, 0.0
    %v1559 = vmax.f32 %v1543, 0.0
    %v1560 = vmax.f32 %v1544, 0.0
    %v1561 = vmax.f32 %v1545, 0.0
    %v1562 = vmax.f32 %v1546, 0.0
    %v1563 = vmax.f32 %v1547, 0.0
    %v1564 = vmax.f32 %v1548, 0.0
    %v1565 = vmax.f32 %v1549, 0.0
    %v1566 = vadd.f32 %v1392, %v132
    %v1567 = vadd.f32 %v1395, %v132
    %v1568 = vadd.f32 %v1400, %v132
    %v1569 = vadd.f32 %v1403, %v132
    %v1570 = vadd.f32 %v1408, %v132
    %v1571 = vadd.f32 %v1411, %v132
    %v1572 = vadd.f32 %v1416, %v132
    %v1573 = vadd.f32 %v1419, %v132
    %v1574 = vadd.f32 %v1424, %v132
    %v1575 = vadd.f32 %v1427, %v132
    %v1576 = vadd.f32 %v1432, %v132
    %v1577 = vadd.f32 %v1435, %v132
    %v1578 = vadd.f32 %v1440, %v132
    %v1579 = vadd.f32 %v1443, %v132
    %v1580 = vadd.f32 %v1448, %v132
    %v1581 = vadd.f32 %v1451, %v132
    %v1582 = vmin.f32 %v1566, 0.0
    %v1583 = vmin.f32 %v1567, 0.0
    %v1584 = vmin.f32 %v1568, 0.0
    %v1585 = vmin.f32 %v1569, 0.0
    %v1586 = vmin.f32 %v1570, 0.0
    %v1587 = vmin.f32 %v1571, 0.0
    %v1588 = vmin.f32 %v1572, 0.0
    %v1589 = vmin.f32 %v1573, 0.0
    %v1590 = vmin.f32 %v1574, 0.0
    %v1591 = vmin.f32 %v1575, 0.0
    %v1592 = vmin.f32 %v1576, 0.0
    %v1593 = vmin.f32 %v1577, 0.0
    %v1594 = vmin.f32 %v1578, 0.0
    %v1595 = vmin.f32 %v1579, 0.0
    %v1596 = vmin.f32 %v1580, 0.0
    %v1597 = vmin.f32 %v1581, 0.0
    %v1598 = vadd.f32 %v1550, %v1582
    %v1599 = vadd.f32 %v1551, %v1583
    %v1600 = vadd.f32 %v1552, %v1584
    %v1601 = vadd.f32 %v1553, %v1585
    %v1602 = vadd.f32 %v1554, %v1586
    %v1603 = vadd.f32 %v1555, %v1587
    %v1604 = vadd.f32 %v1556, %v1588
    %v1605 = vadd.f32 %v1557, %v1589
    %v1606 = vadd.f32 %v1558, %v1590
    %v1607 = vadd.f32 %v1559, %v1591
    %v1608 = vadd.f32 %v1560, %v1592
    %v1609 = vadd.f32 %v1561, %v1593
    %v1610 = vadd.f32 %v1562, %v1594
    %v1611 = vadd.f32 %v1563, %v1595
    %v1612 = vadd.f32 %v1564, %v1596
    %v1613 = vadd.f32 %v1565, %v1597
    %v1614 = vmul.f32 %v279, %v1518
    %v1615 = vmul.f32 %v279, %v1519
    %v1616 = vmul.f32 %v279, %v1520
    %v1617 = vmul.f32 %v279, %v1521
    %v1618 = vmul.f32 %v279, %v1522
    %v1619 = vmul.f32 %v279, %v1523
    %v1620 = vmul.f32 %v279, %v1524
    %v1621 = vmul.f32 %v279, %v1525
    %v1622 = vmul.f32 %v279, %v1526
    %v1623 = vmul.f32 %v279, %v1527
    %v1624 = vmul.f32 %v279, %v1528
    %v1625 = vmul.f32 %v279, %v1529
    %v1626 = vmul.f32 %v279, %v1530
    %v1627 = vmul.f32 %v279, %v1531
    %v1628 = vmul.f32 %v279, %v1532
    %v1629 = vmul.f32 %v279, %v1533
    %v1630 = vmul.f32 %v296, %v1598
    %v1631 = vmul.f32 %v296, %v1599
    %v1632 = vmul.f32 %v296, %v1600
    %v1633 = vmul.f32 %v296, %v1601
    %v1634 = vmul.f32 %v296, %v1602
    %v1635 = vmul.f32 %v296, %v1603
    %v1636 = vmul.f32 %v296, %v1604
    %v1637 = vmul.f32 %v296, %v1605
    %v1638 = vmul.f32 %v296, %v1606
    %v1639 = vmul.f32 %v296, %v1607
    %v1640 = vmul.f32 %v296, %v1608
    %v1641 = vmul.f32 %v296, %v1609
    %v1642 = vmul.f32 %v296, %v1610
    %v1643 = vmul.f32 %v296, %v1611
    %v1644 = vmul.f32 %v296, %v1612
    %v1645 = vmul.f32 %v296, %v1613
    %v1646 = vadd.f32 %v1614, %v1630
    %v1647 = vadd.f32 %v1615, %v1631
    %v1648 = vadd.f32 %v1616, %v1632
    %v1649 = vadd.f32 %v1617, %v1633
    %v1650 = vadd.f32 %v1618, %v1634
    %v1651 = vadd.f32 %v1619, %v1635
    %v1652 = vadd.f32 %v1620, %v1636
    %v1653 = vadd.f32 %v1621, %v1637
    %v1654 = vadd.f32 %v1622, %v1638
    %v1655 = vadd.f32 %v1623, %v1639
    %v1656 = vadd.f32 %v1624, %v1640
    %v1657 = vadd.f32 %v1625, %v1641
    %v1658 = vadd.f32 %v1626, %v1642
    %v1659 = vadd.f32 %v1627, %v1643
    %v1660 = vadd.f32 %v1628, %v1644
    %v1661 = vadd.f32 %v1629, %v1645
    %v1662 = vld [vmem:[%s5] sm:$0x1]
    %v1664 = vlaneseq
    %v1665 = vshrl.u32 %v1664, 7
    %v1666 = vsub.s32 0, %v1665
    %v1667 = vrot.slane %v1662, %v1666
    %v1669 = vsub.f32 %v1646, %v1667
    %v1670 = vsub.f32 %v1647, %v1667
    %v1671 = vsub.f32 %v1648, %v1667
    %v1672 = vsub.f32 %v1649, %v1667
    %v1673 = vsub.f32 %v1650, %v1667
    %v1674 = vsub.f32 %v1651, %v1667
    %v1675 = vsub.f32 %v1652, %v1667
    %v1676 = vsub.f32 %v1653, %v1667
    %v1677 = vsub.f32 %v1654, %v1667
    %v1678 = vsub.f32 %v1655, %v1667
    %v1679 = vsub.f32 %v1656, %v1667
    %v1680 = vsub.f32 %v1657, %v1667
    %v1681 = vsub.f32 %v1658, %v1667
    %v1682 = vsub.f32 %v1659, %v1667
    %v1683 = vsub.f32 %v1660, %v1667
    %v1684 = vsub.f32 %v1661, %v1667
    %v1685 = vld [vmem:[#allocation10] sm:$0xf]
    %v1686 = vld [vmem:[#allocation10 + $0x4] sm:$0xf]
    %v1687 = vld [vmem:[#allocation10 + $0x8] sm:$0xf]
    %v1688 = vld [vmem:[#allocation10 + $0xc] sm:$0xf]
    %v1689 = vld [vmem:[#allocation10 + $0x10] sm:$0xf]
    %v1690 = vld [vmem:[#allocation10 + $0x14] sm:$0xf]
    %v1691 = vld [vmem:[#allocation10 + $0x18] sm:$0xf]
    %v1692 = vld [vmem:[#allocation10 + $0x1c] sm:$0xf]
    %v1693 = vld [vmem:[#allocation10 + $0x20] sm:$0xf]
    %v1694 = vld [vmem:[#allocation10 + $0x24] sm:$0xf]
    %v1695 = vld [vmem:[#allocation10 + $0x28] sm:$0xf]
    %v1696 = vld [vmem:[#allocation10 + $0x2c] sm:$0xf]
    %v1697 = vld [vmem:[#allocation10 + $0x30] sm:$0xf]
    %v1698 = vld [vmem:[#allocation10 + $0x34] sm:$0xf]
    %v1699 = vld [vmem:[#allocation10 + $0x38] sm:$0xf]
    %v1700 = vld [vmem:[#allocation10 + $0x3c] sm:$0xf]
    %v1701 = vpack.c.bf16 %v1670, %v1669
    %v1702 = vpack.c.bf16 %v1672, %v1671
    %v1703 = vpack.c.bf16 %v1674, %v1673
    %v1704 = vpack.c.bf16 %v1676, %v1675
    %v1705 = vpack.c.bf16 %v1678, %v1677
    %v1706 = vpack.c.bf16 %v1680, %v1679
    %v1707 = vpack.c.bf16 %v1682, %v1681
    %v1708 = vpack.c.bf16 %v1684, %v1683
    %v1725 = vunpack.c.l.b16 %v1685
    %v1726 = vunpack.c.l.b16 %v1686
    %v1727 = vunpack.c.l.b16 %v1687
    %v1728 = vunpack.c.l.b16 %v1688
    %v1729 = vunpack.c.l.b16 %v1689
    %v1730 = vunpack.c.l.b16 %v1690
    %v1731 = vunpack.c.l.b16 %v1691
    %v1732 = vunpack.c.l.b16 %v1692
    %v1733 = vunpack.c.l.b16 %v1693
    %v1734 = vunpack.c.l.b16 %v1694
    %v1735 = vunpack.c.l.b16 %v1695
    %v1736 = vunpack.c.l.b16 %v1696
    %v1737 = vunpack.c.l.b16 %v1697
    %v1738 = vunpack.c.l.b16 %v1698
    %v1739 = vunpack.c.l.b16 %v1699
    %v1740 = vunpack.c.l.b16 %v1700
    %v1741 = vpack.c.b16 %v1726, %v1725
    %v1742 = vpack.c.b16 %v1728, %v1727
    %v1743 = vpack.c.b16 %v1730, %v1729
    %v1744 = vpack.c.b16 %v1732, %v1731
    %v1745 = vpack.c.b16 %v1734, %v1733
    %v1746 = vpack.c.b16 %v1736, %v1735
    %v1747 = vpack.c.b16 %v1738, %v1737
    %v1748 = vpack.c.b16 %v1740, %v1739
    %1757 = vmatprep.subr.bf16.mxu0 0
    %1758 = vmatpush1.bf16.msra.mxu0 %v1701
    %1759 = vmatprep.subr.bf16.mxu0 0
    %1760 = vmatpush1.bf16.msra.mxu0 %v1702
    %1761 = vmatprep.subr.bf16.mxu0 0
    %1762 = vmatpush1.bf16.msra.mxu0 %v1703
    %1763 = vmatprep.subr.bf16.mxu0 0
    %1764 = vmatpush1.bf16.msra.mxu0 %v1704
    %1765 = vmatprep.subr.bf16.mxu0 0
    %1766 = vmatpush1.bf16.msra.mxu0 %v1705
    %1767 = vmatprep.subr.bf16.mxu0 0
    %1768 = vmatpush1.bf16.msra.mxu0 %v1706
    %1769 = vmatprep.subr.bf16.mxu0 0
    %1770 = vmatpush1.bf16.msra.mxu0 %v1707
    %1771 = vmatprep.subr.bf16.mxu0 0
    %1772 = vmatpush1.bf16.msra.mxu0 %v1708
    %1773 = vmatprep.subr.bf16.mxu0 0
    %1774 = vmatpush1.bf16.msra.mxu0 0
    %1775 = vmatprep.subr.bf16.mxu0 0
    %1776 = vmatpush1.bf16.msra.mxu0 0
    %1777 = vmatprep.subr.bf16.mxu0 0
    %1778 = vmatpush1.bf16.msra.mxu0 0
    %1779 = vmatprep.subr.bf16.mxu0 0
    %1780 = vmatpush1.bf16.msra.mxu0 0
    %1781 = vmatprep.subr.bf16.mxu0 0
    %1782 = vmatpush1.bf16.msra.mxu0 0
    %1783 = vmatprep.subr.bf16.mxu0 0
    %1784 = vmatpush1.bf16.msra.mxu0 0
    %1785 = vmatprep.subr.bf16.mxu0 0
    %1786 = vmatpush1.bf16.msra.mxu0 0
    %1787 = vmatprep.subr.bf16.mxu0 0
    %1788 = vmatpush1.bf16.msra.mxu0 0
    %1789 = vmatprep.mubr.bf16.mxu0 0
    %1790 = vmatmul.mubr.bf16.gmra.mrb[0].mxu0 %v1741
    %v1791 = vpop.f32.mrb[0].mxu0
    %v1792 = vadd.f32 0.0, %v1791
    %v1793 = vpop.f32.mrb[0].mxu0
    %v1794 = vpop.f32.mrb[0].mxu0
    %v1795 = vadd.f32 0.0, %v1794
    %v1796 = vpop.f32.mrb[0].mxu0
    %1797 = vmatprep.mubr.bf16.mxu0 0
    %1798 = vmatmul.mubr.bf16.gmra.mrb[0].mxu0 %v1742
    %v1799 = vpop.f32.mrb[0].mxu0
    %v1800 = vadd.f32 0.0, %v1799
    %v1801 = vpop.f32.mrb[0].mxu0
    %v1802 = vpop.f32.mrb[0].mxu0
    %v1803 = vadd.f32 0.0, %v1802
    %v1804 = vpop.f32.mrb[0].mxu0
    %1805 = vmatprep.mubr.bf16.mxu0 0
    %1806 = vmatmul.mubr.bf16.gmra.mrb[0].mxu0 %v1743
    %v1807 = vpop.f32.mrb[0].mxu0
    %v1808 = vadd.f32 0.0, %v1807
    %v1809 = vpop.f32.mrb[0].mxu0
    %v1810 = vpop.f32.mrb[0].mxu0
    %v1811 = vadd.f32 0.0, %v1810
    %v1812 = vpop.f32.mrb[0].mxu0
    %1813 = vmatprep.mubr.bf16.mxu0 0
    %1814 = vmatmul.mubr.bf16.gmra.mrb[0].mxu0 %v1744
    %v1815 = vpop.f32.mrb[0].mxu0
    %v1816 = vadd.f32 0.0, %v1815
    %v1817 = vpop.f32.mrb[0].mxu0
    %v1818 = vpop.f32.mrb[0].mxu0
    %v1819 = vadd.f32 0.0, %v1818
    %v1820 = vpop.f32.mrb[0].mxu0
    %1821 = vmatprep.mubr.bf16.mxu0 0
    %1822 = vmatmul.mubr.bf16.gmra.mrb[0].mxu0 %v1745
    %v1823 = vpop.f32.mrb[0].mxu0
    %v1824 = vadd.f32 0.0, %v1823
    %v1825 = vpop.f32.mrb[0].mxu0
    %v1826 = vpop.f32.mrb[0].mxu0
    %v1827 = vadd.f32 0.0, %v1826
    %v1828 = vpop.f32.mrb[0].mxu0
    %1829 = vmatprep.mubr.bf16.mxu0 0
    %1830 = vmatmul.mubr.bf16.gmra.mrb[0].mxu0 %v1746
    %v1831 = vpop.f32.mrb[0].mxu0
    %v1832 = vadd.f32 0.0, %v1831
    %v1833 = vpop.f32.mrb[0].mxu0
    %v1834 = vpop.f32.mrb[0].mxu0
    %v1835 = vadd.f32 0.0, %v1834
    %v1836 = vpop.f32.mrb[0].mxu0
    %1837 = vmatprep.mubr.bf16.mxu0 0
    %1838 = vmatmul.mubr.bf16.gmra.mrb[0].mxu0 %v1747
    %v1839 = vpop.f32.mrb[0].mxu0
    %v1840 = vadd.f32 0.0, %v1839
    %v1841 = vpop.f32.mrb[0].mxu0
    %v1842 = vpop.f32.mrb[0].mxu0
    %v1843 = vadd.f32 0.0, %v1842
    %v1844 = vpop.f32.mrb[0].mxu0
    %1845 = vmatprep.mubr.bf16.mxu0 0
    %1846 = vmatmul.mubr.bf16.gmra.mrb[0].mxu0 %v1748
    %v1847 = vpop.f32.mrb[0].mxu0
    %v1848 = vadd.f32 0.0, %v1847
    %v1849 = vpop.f32.mrb[0].mxu0
    %v1850 = vpop.f32.mrb[0].mxu0
    %v1851 = vadd.f32 0.0, %v1850
    %v1852 = vpop.f32.mrb[0].mxu0
    %1853 = vdwg.mxu0
    %s1854 = scalar_lea.vmem [#allocation12], 256
    %1855 = vst [vmem:[%s1854] sm:$0xff] %v1792
    %1856 = vst [vmem:[%s1854 + $0x8] sm:$0xff] %v1795
    %1857 = vst [vmem:[%s1854 + $0x10] sm:$0xff] %v1800
    %1858 = vst [vmem:[%s1854 + $0x18] sm:$0xff] %v1803
    %1859 = vst [vmem:[%s1854 + $0x20] sm:$0xff] %v1808
    %1860 = vst [vmem:[%s1854 + $0x28] sm:$0xff] %v1811
    %1861 = vst [vmem:[%s1854 + $0x30] sm:$0xff] %v1816
    %1862 = vst [vmem:[%s1854 + $0x38] sm:$0xff] %v1819
    %1863 = vst [vmem:[%s1854 + $0x40] sm:$0xff] %v1824
    %1864 = vst [vmem:[%s1854 + $0x48] sm:$0xff] %v1827
    %1865 = vst [vmem:[%s1854 + $0x50] sm:$0xff] %v1832
    %1866 = vst [vmem:[%s1854 + $0x58] sm:$0xff] %v1835
    %1867 = vst [vmem:[%s1854 + $0x60] sm:$0xff] %v1840
    %1868 = vst [vmem:[%s1854 + $0x68] sm:$0xff] %v1843
    %1869 = vst [vmem:[%s1854 + $0x70] sm:$0xff] %v1848
    %1870 = vst [vmem:[%s1854 + $0x78] sm:$0xff] %v1851
    // Predicated region
    $region46: #{tpu_custom_call.1} parent=1 // pred_check
      _
    $region47: #{tpu_custom_call.1} parent=1 // pred_check_branch
      %1872 = sbr.rel (0) target = $region49
    $region48: #{tpu_custom_call.1} parent=1 // pred_region
      %s1874 = ssub.s32 6144, 6144
      %1875 = vsyncadd [#allocation4], %s1874
      %s1876 = sshll.u32 [#allocation12], 4
      %s1877 = int_to_ptr.vmem [resolvable:$true] %s1876
      %1882 = dma.vmem_to_hbm [thread:$0]  %s1877, 6144, %s6, [#allocation4], 128, 128, 8
    $region49: #{tpu_custom_call.1} parent=1 // pred_fallthru
      _
    // Predicated region
    $region50: #{tpu_custom_call.1} parent=1 // pred_check
      _
    $region51: #{tpu_custom_call.1} parent=1 // pred_check_branch
      %1884 = sbr.rel (0) target = $region53
    $region52: #{tpu_custom_call.1} parent=1 // pred_region
      %1885 = dma.done [#allocation4], 6144
    $region53: #{tpu_custom_call.1} parent=1 // pred_fallthru
      _
    %1886 = vsyncpa [#allocation3], 1
    %1887 = vsyncpa [#allocation8], 1
    %1888 = vsyncpa [#allocation11], 1
    %1889 = vsyncpa [#allocation4], 1
    %1890 = vsyncpa [#allocation5], 1

</llo_original>
